<compile_context>
chip_gen: v6e
topology: v6e:2x2x1
jax: 0.10.0
libtpu: 0.0.40
codegen_flags: <defaults>
</compile_context>

<pallas_src>
import functools
import math

import jax
import jax.numpy as jnp
from jax import lax
from jax.experimental import pallas as pl
from jax.experimental.pallas import tpu as pltpu

NEG_SLOPE = 0.01   # nn.LeakyReLU default
EPS = 1e-6         # module's self.eps


def _leaky_relu(x):
    return jnp.where(x > 0, x, NEG_SLOPE * x)


def _sigmoid(x):
    # numerically stable sigmoid; lowers to one EUP tanh
    return 0.5 * (jnp.tanh(0.5 * x) + 1.0)


def _softplus(x):
    # PyTorch F.softplus with default beta=1, threshold=20
    return jnp.where(x > 20.0, x, jnp.log1p(jnp.exp(jnp.minimum(x, 20.0))))


def _policy_kernel(x_ref,                       # (T*B, IN)
                   w1_ref, b1_ref,              # (IN, H), (1, H)
                   wih_ref, whh_ref, blstm_ref, # (H, 4H), (H, 4H), (1, 4H)
                   whead_ref, bhead_ref,        # (H, 2*OUT), (1, 2*OUT)
                   head_ref, hid_ref,           # (T*B, 2*OUT), (2, T*B, H)
                   gx_sc, lstm_sc, c_sc,        # (T*B,4H), (T*B,H), (T*B,H)
                   *, T, B, H, OUT):
    # ---- phase 1: batched, time-invariant matmuls (MXU, once per call) ----
    shared = _leaky_relu(
        jnp.dot(x_ref[...], w1_ref[...], preferred_element_type=jnp.float32)
        + b1_ref[...])                                              # (T*B, H)
    gx_sc[...] = (jnp.dot(shared, wih_ref[...],
                          preferred_element_type=jnp.float32)
                  + blstm_ref[...])                                 # (T*B, 4H)

    # ---- phase 2: sequential LSTM recurrence (state carried in vregs) ----
    w_hh = whh_ref[...]                                             # hoisted load

    # Loop-invariant lane mask selecting the "g" (cell candidate) gate block.
    # PyTorch gate order along 4H lanes: i, f, g, o.
    lane = lax.broadcasted_iota(jnp.int32, (B, 4 * H), 1)
    is_gblk = (lane >= 2 * H) & (lane < 3 * H)

    h = jnp.zeros((B, H), jnp.float32)           # init_hidden(): zero h / c
    c = jnp.zeros((B, H), jnp.float32)

    # T is small at these shapes -> full unroll with concrete t (static slices).
    for t in range(T):
        g = gx_sc[t * B:(t + 1) * B, :] + jnp.dot(
            h, w_hh, preferred_element_type=jnp.float32)            # (B, 4H)
        # Fused nonlinearity: one full-vreg tanh.  sigmoid(x)=0.5*(tanh(0.5x)+1)
        t_all = jnp.tanh(jnp.where(is_gblk, g, 0.5 * g))
        gates = jnp.where(is_gblk, t_all, 0.5 * (t_all + 1.0))
        i_g = gates[:, 0 * H:1 * H]
        f_g = gates[:, 1 * H:2 * H]
        g_g = gates[:, 2 * H:3 * H]
        o_g = gates[:, 3 * H:4 * H]

        c = f_g * c + i_g * g_g
        h = o_g * jnp.tanh(c)
        lstm_sc[t * B:(t + 1) * B, :] = h
        c_sc[t * B:(t + 1) * B, :] = c

    # ---- hidden history: shift-by-one bulk copies (off the serial chain) ----
    # hidden_outputs[t] = (h, c) BEFORE step t  ==  (zeros at t=0, step t-1 after)
    zeros_blk = jnp.zeros((B, H), jnp.float32)
    hid_ref[0, :, :] = jnp.concatenate(
        [zeros_blk, lstm_sc[0:(T - 1) * B, :]], axis=0)             # h history
    hid_ref[1, :, :] = jnp.concatenate(
        [zeros_blk, c_sc[0:(T - 1) * B, :]], axis=0)                # c history

    # ---- phase 3: fused mean/std heads, batched over T*B rows (MXU) ----
    act = _leaky_relu(lstm_sc[...])                                 # (T*B, H)
    head = (jnp.dot(act, whead_ref[...], preferred_element_type=jnp.float32)
            + bhead_ref[...])                                       # (T*B, 2*OUT)
    lane_o = lax.broadcasted_iota(jnp.int32, (T * B, 2 * OUT), 1)
    head_ref[...] = jnp.where(lane_o < OUT,
                              jnp.tanh(head),
                              _softplus(head) + EPS)


def gaussian_lstm_policy_forward(x, params):
    """x: (T, B, IN) float32.  params: dict of weights (see init_params)."""
    T, B, IN = x.shape
    H = params["w1"].shape[0]
    OUT = params["wm"].shape[0]

    # Host-side layout plumbing (free): flatten time*batch, pre-transpose
    # weights, fuse LSTM biases, fuse the two heads into a single Linear.
    x2d = x.reshape(T * B, IN)
    w1_t = params["w1"].T                                   # (IN, H)
    w_ih_t = params["w_ih"].T                               # (H, 4H)
    w_hh_t = params["w_hh"].T                               # (H, 4H)
    b_lstm = params["b_ih"] + params["b_hh"]                # (1, 4H)
    w_head = jnp.concatenate([params["wm"].T, params["ws"].T], axis=1)  # (H, 2*OUT)
    b_head = jnp.concatenate([params["bm"], params["bs"]], axis=1)      # (1, 2*OUT)

    kernel = functools.partial(_policy_kernel, T=T, B=B, H=H, OUT=OUT)

    full = lambda shape: pl.BlockSpec(shape, lambda i: (0,) * len(shape))

    grid_spec = pltpu.PrefetchScalarGridSpec(
        num_scalar_prefetch=0,
        grid=(1,),                                  # single in-kernel pass
        in_specs=[
            full((T * B, IN)),                      # flattened inputs
            full((IN, H)), full((1, H)),            # shared Linear (pre-T)
            full((H, 4 * H)), full((H, 4 * H)),     # W_ih^T, W_hh^T
            full((1, 4 * H)),                       # fused b_ih + b_hh
            full((H, 2 * OUT)), full((1, 2 * OUT)), # fused mean/std head
        ],
        out_specs=[
            full((T * B, 2 * OUT)),                 # fused head slab
            full((2, T * B, H)),                    # [h-history; c-history]
        ],
        scratch_shapes=[
            pltpu.VMEM((T * B, 4 * H), jnp.float32),  # precomputed gates_x
            pltpu.VMEM((T * B, H), jnp.float32),      # per-step h
            pltpu.VMEM((T * B, H), jnp.float32),      # per-step c
        ],
    )

    out_shapes = (
        jax.ShapeDtypeStruct((T * B, 2 * OUT), jnp.float32),
        jax.ShapeDtypeStruct((2, T * B, H), jnp.float32),
    )

    head, hid2d = pl.pallas_call(
        kernel,
        out_shape=out_shapes,
        grid_spec=grid_spec,
        compiler_params=pltpu.CompilerParams(
            dimension_semantics=("arbitrary",),
            vmem_limit_bytes=32 * 1024 * 1024),
    )(x2d, w1_t, params["b1"], w_ih_t, w_hh_t, b_lstm, w_head, b_head)

    # Free wrapper-side layout plumbing back to the PyTorch shapes.
    means = head[:, :OUT].reshape(T, B, OUT)
    stds = head[:, OUT:].reshape(T, B, OUT)
    hidden_outputs = hid2d.reshape(2, T, B, H).transpose(1, 0, 2, 3)
    return means, stds, hidden_outputs


def init_params(key, in_features, out_features, hidden_size):
    """Deterministic parameter init mimicking PyTorch uniform(-1/sqrt(fan), 1/sqrt(fan))."""
    ks = jax.random.split(key, 10)
    u = lambda k, shape, fan: jax.random.uniform(
        k, shape, jnp.float32, -1.0 / math.sqrt(fan), 1.0 / math.sqrt(fan))
    H = hidden_size
    return {
        "w1":   u(ks[0], (H, in_features), in_features),
        "b1":   u(ks[1], (1, H), in_features),
        "w_ih": u(ks[2], (4 * H, H), H),
        "b_ih": u(ks[3], (1, 4 * H), H),
        "w_hh": u(ks[4], (4 * H, H), H),
        "b_hh": u(ks[5], (1, 4 * H), H),
        "wm":   u(ks[6], (out_features, H), H),
        "bm":   u(ks[7], (1, out_features), H),
        "ws":   u(ks[8], (out_features, H), H),
        "bs":   u(ks[9], (1, out_features), H),
    }


def reference_forward(x, params):
    """Pure-JAX replica of the PyTorch forward (num_layers=1, no dones/input_hidden)."""
    T, B, _ = x.shape
    H = params["w1"].shape[0]
    shared = _leaky_relu(jnp.einsum("tbi,hi->tbh", x, params["w1"]) + params["b1"][0])
    h = jnp.zeros((B, H), jnp.float32)
    c = jnp.zeros((B, H), jnp.float32)
    outs, hids = [], []
    for t in range(T):
        hids.append(jnp.stack([h, c], axis=0))
        gates = (shared[t] @ params["w_ih"].T + params["b_ih"][0]
                 + h @ params["w_hh"].T + params["b_hh"][0])
        i_g = _sigmoid(gates[:, 0 * H:1 * H])
        f_g = _sigmoid(gates[:, 1 * H:2 * H])
        g_g = jnp.tanh(gates[:, 2 * H:3 * H])
        o_g = _sigmoid(gates[:, 3 * H:4 * H])
        c = f_g * c + i_g * g_g
        h = o_g * jnp.tanh(c)
        outs.append(h)
    lstm_out = jnp.stack(outs, axis=0)
    act = _leaky_relu(lstm_out)
    means = jnp.tanh(jnp.einsum("tbh,oh->tbo", act, params["wm"]) + params["bm"][0])
    stds = _softplus(jnp.einsum("tbh,oh->tbo", act, params["ws"]) + params["bs"][0]) + EPS
    return means, stds, jnp.stack(hids, axis=0)


if __name__ == "__main__":
    SEQ, BATCH, IN, HID, OUT = 8, 4, 16, 32, 8

    key = jax.random.PRNGKey(0)
    kx, kp = jax.random.split(key)
    x = jax.random.normal(kx, (SEQ, BATCH, IN), dtype=jnp.float32)
    params = init_params(kp, IN, OUT, HID)

    fwd = jax.jit(gaussian_lstm_policy_forward)
    means, stds, hidden_outputs = jax.block_until_ready(fwd(x, params))

    ref_means, ref_stds, ref_hid = reference_forward(x, params)
    assert means.shape == (SEQ, BATCH, OUT)
    assert stds.shape == (SEQ, BATCH, OUT)
    assert hidden_outputs.shape == (SEQ, 2, BATCH, HID)
    assert jnp.allclose(means, ref_means, atol=1e-4)
    assert jnp.allclose(stds, ref_stds, atol=1e-4)
    assert jnp.allclose(hidden_outputs, ref_hid, atol=1e-4)

    print("KERNEL_OK")
</pallas_src>

<mosaic_0001>
module attributes {stable_mosaic.version = 11 : i64} {
  func.func @_policy_kernel(%arg0: i32, %arg1: memref<32x16xf32, #tpu.memory_space<vmem>>, %arg2: memref<16x32xf32, #tpu.memory_space<vmem>>, %arg3: memref<1x32xf32, #tpu.memory_space<vmem>>, %arg4: memref<32x128xf32, #tpu.memory_space<vmem>>, %arg5: memref<32x128xf32, #tpu.memory_space<vmem>>, %arg6: memref<1x128xf32, #tpu.memory_space<vmem>>, %arg7: memref<32x16xf32, #tpu.memory_space<vmem>>, %arg8: memref<1x16xf32, #tpu.memory_space<vmem>>, %arg9: memref<32x16xf32, #tpu.memory_space<vmem>>, %arg10: memref<2x32x32xf32, #tpu.memory_space<vmem>>, %arg11: memref<32x128xf32, #tpu.memory_space<vmem>>, %arg12: memref<32x32xf32, #tpu.memory_space<vmem>>, %arg13: memref<32x32xf32, #tpu.memory_space<vmem>>) attributes {dimension_semantics = [#tpu.dimension_semantics<arbitrary>], iteration_bounds = array<i64: 1>, scalar_prefetch = 0 : i64, scratch_operands = 3 : i64, tpu.core_type = #tpu.core_type<tc>, window_params = [{pipeline_mode = #tpu.pipeline_mode<synchronous>, transform_indices = @transform_0, window_bounds = array<i64: 32, 16>}, {pipeline_mode = #tpu.pipeline_mode<synchronous>, transform_indices = @transform_1, window_bounds = array<i64: 16, 32>}, {pipeline_mode = #tpu.pipeline_mode<synchronous>, transform_indices = @transform_2, window_bounds = array<i64: 1, 32>}, {pipeline_mode = #tpu.pipeline_mode<synchronous>, transform_indices = @transform_3, window_bounds = array<i64: 32, 128>}, {pipeline_mode = #tpu.pipeline_mode<synchronous>, transform_indices = @transform_4, window_bounds = array<i64: 32, 128>}, {pipeline_mode = #tpu.pipeline_mode<synchronous>, transform_indices = @transform_5, window_bounds = array<i64: 1, 128>}, {pipeline_mode = #tpu.pipeline_mode<synchronous>, transform_indices = @transform_6, window_bounds = array<i64: 32, 16>}, {pipeline_mode = #tpu.pipeline_mode<synchronous>, transform_indices = @transform_7, window_bounds = array<i64: 1, 16>}, {pipeline_mode = #tpu.pipeline_mode<synchronous>, transform_indices = @transform_8, window_bounds = array<i64: 32, 16>}, {pipeline_mode = #tpu.pipeline_mode<synchronous>, transform_indices = @transform_9, window_bounds = array<i64: 2, 32, 32>}]} {
    %c0 = arith.constant 0 : index
    %c0_0 = arith.constant 0 : index
    %0 = vector.load %arg1[%c0, %c0_0] : memref<32x16xf32, #tpu.memory_space<vmem>>, vector<32x16xf32>
    %c0_1 = arith.constant 0 : index
    %c0_2 = arith.constant 0 : index
    %1 = vector.load %arg2[%c0_1, %c0_2] : memref<16x32xf32, #tpu.memory_space<vmem>>, vector<16x32xf32>
    %cst = arith.constant dense<0.000000e+00> : vector<32x32xf32>
    %2 = tpu.matmul %0, %1, %cst {dimension_numbers = #tpu.dot_dimension_numbers<[1], [0], [0], [1], [0, 0, 1, 1], [], []>} : vector<32x16xf32>, vector<16x32xf32>, vector<32x32xf32> -> vector<32x32xf32>
    %c0_3 = arith.constant 0 : index
    %c0_4 = arith.constant 0 : index
    %3 = vector.load %arg3[%c0_3, %c0_4] : memref<1x32xf32, #tpu.memory_space<vmem>>, vector<1x32xf32>
    %4 = vector.broadcast %3 : vector<1x32xf32> to vector<32x32xf32>
    %5 = arith.addf %2, %4 : vector<32x32xf32>
    %cst_5 = arith.constant 0.000000e+00 : f32
    %6 = vector.broadcast %cst_5 : f32 to vector<32x32xf32>
    %7 = arith.cmpf ogt, %5, %6 : vector<32x32xf32>
    %cst_6 = arith.constant 0.00999999977 : f32
    %8 = vector.broadcast %cst_6 : f32 to vector<32x32xf32>
    %9 = arith.mulf %8, %5 : vector<32x32xf32>
    %10 = arith.select %7, %5, %9 : vector<32x32xi1>, vector<32x32xf32>
    %c0_7 = arith.constant 0 : index
    %c0_8 = arith.constant 0 : index
    %11 = vector.load %arg4[%c0_7, %c0_8] : memref<32x128xf32, #tpu.memory_space<vmem>>, vector<32x128xf32>
    %cst_9 = arith.constant dense<0.000000e+00> : vector<32x128xf32>
    %12 = tpu.matmul %10, %11, %cst_9 {dimension_numbers = #tpu.dot_dimension_numbers<[1], [0], [0], [1], [0, 0, 1, 1], [], []>} : vector<32x32xf32>, vector<32x128xf32>, vector<32x128xf32> -> vector<32x128xf32>
    %c0_10 = arith.constant 0 : index
    %c0_11 = arith.constant 0 : index
    %13 = vector.load %arg6[%c0_10, %c0_11] : memref<1x128xf32, #tpu.memory_space<vmem>>, vector<1x128xf32>
    %14 = vector.broadcast %13 : vector<1x128xf32> to vector<32x128xf32>
    %15 = arith.addf %12, %14 : vector<32x128xf32>
    %c0_12 = arith.constant 0 : index
    %c0_13 = arith.constant 0 : index
    %16 = vector.load %arg11[%c0_12, %c0_13] : memref<32x128xf32, #tpu.memory_space<vmem>>, vector<32x128xf32>
    tpu.vector_store %arg11[%c0_12, %c0_13], %15 {strides = array<i32>} : memref<32x128xf32, #tpu.memory_space<vmem>>, vector<32x128xf32>,
    %c0_14 = arith.constant 0 : index
    %c0_15 = arith.constant 0 : index
    %17 = vector.load %arg5[%c0_14, %c0_15] : memref<32x128xf32, #tpu.memory_space<vmem>>, vector<32x128xf32>
    %18 = tpu.iota {dimensions = array<i32: 1>} : vector<4x128xi32>
    %c64_i32 = arith.constant 64 : i32
    %19 = vector.broadcast %c64_i32 : i32 to vector<4x128xi32>
    %20 = arith.cmpi sge, %18, %19 : vector<4x128xi32>
    %c96_i32 = arith.constant 96 : i32
    %21 = vector.broadcast %c96_i32 : i32 to vector<4x128xi32>
    %22 = arith.cmpi slt, %18, %21 : vector<4x128xi32>
    %23 = arith.andi %20, %22 : vector<4x128xi1>
    %cst_16 = arith.constant 0.000000e+00 : f32
    %24 = vector.broadcast %cst_16 : f32 to vector<4x32xf32>
    %cst_17 = arith.constant 0.000000e+00 : f32
    %25 = vector.broadcast %cst_17 : f32 to vector<4x32xf32>
    %c0_18 = arith.constant 0 : index
    %c0_19 = arith.constant 0 : index
    %26 = vector.load %arg11[%c0_18, %c0_19] : memref<32x128xf32, #tpu.memory_space<vmem>>, vector<4x128xf32>
    %cst_20 = arith.constant dense<0.000000e+00> : vector<4x128xf32>
    %27 = tpu.matmul %24, %17, %cst_20 {dimension_numbers = #tpu.dot_dimension_numbers<[1], [0], [0], [1], [0, 0, 1, 1], [], []>} : vector<4x32xf32>, vector<32x128xf32>, vector<4x128xf32> -> vector<4x128xf32>
    %28 = arith.addf %26, %27 : vector<4x128xf32>
    %cst_21 = arith.constant 5.000000e-01 : f32
    %29 = vector.broadcast %cst_21 : f32 to vector<4x128xf32>
    %30 = arith.mulf %29, %28 : vector<4x128xf32>
    %31 = arith.select %23, %28, %30 : vector<4x128xi1>, vector<4x128xf32>
    %32 = math.tanh %31 : vector<4x128xf32>
    %cst_22 = arith.constant 1.000000e+00 : f32
    %33 = vector.broadcast %cst_22 : f32 to vector<4x128xf32>
    %34 = arith.addf %32, %33 : vector<4x128xf32>
    %cst_23 = arith.constant 5.000000e-01 : f32
    %35 = vector.broadcast %cst_23 : f32 to vector<4x128xf32>
    %36 = arith.mulf %35, %34 : vector<4x128xf32>
    %37 = arith.select %23, %32, %36 : vector<4x128xi1>, vector<4x128xf32>
    %38 = vector.extract_strided_slice %37 {offsets = [0, 0], sizes = [4, 32], strides = [1, 1]} : vector<4x128xf32> to vector<4x32xf32>
    %39 = vector.extract_strided_slice %37 {offsets = [0, 32], sizes = [4, 32], strides = [1, 1]} : vector<4x128xf32> to vector<4x32xf32>
    %40 = vector.extract_strided_slice %37 {offsets = [0, 64], sizes = [4, 32], strides = [1, 1]} : vector<4x128xf32> to vector<4x32xf32>
    %41 = vector.extract_strided_slice %37 {offsets = [0, 96], sizes = [4, 32], strides = [1, 1]} : vector<4x128xf32> to vector<4x32xf32>
    %42 = arith.mulf %39, %25 : vector<4x32xf32>
    %43 = arith.mulf %38, %40 : vector<4x32xf32>
    %44 = arith.addf %42, %43 : vector<4x32xf32>
    %45 = math.tanh %44 : vector<4x32xf32>
    %46 = arith.mulf %41, %45 : vector<4x32xf32>
    %c0_24 = arith.constant 0 : index
    %c0_25 = arith.constant 0 : index
    %47 = vector.load %arg12[%c0_24, %c0_25] : memref<32x32xf32, #tpu.memory_space<vmem>>, vector<4x32xf32>
    tpu.vector_store %arg12[%c0_24, %c0_25], %46 {strides = array<i32>} : memref<32x32xf32, #tpu.memory_space<vmem>>, vector<4x32xf32>,
    %c0_26 = arith.constant 0 : index
    %c0_27 = arith.constant 0 : index
    %48 = vector.load %arg13[%c0_26, %c0_27] : memref<32x32xf32, #tpu.memory_space<vmem>>, vector<4x32xf32>
    tpu.vector_store %arg13[%c0_26, %c0_27], %44 {strides = array<i32>} : memref<32x32xf32, #tpu.memory_space<vmem>>, vector<4x32xf32>,
    %c4 = arith.constant 4 : index
    %c0_28 = arith.constant 0 : index
    %49 = vector.load %arg11[%c4, %c0_28] : memref<32x128xf32, #tpu.memory_space<vmem>>, vector<4x128xf32>
    %cst_29 = arith.constant dense<0.000000e+00> : vector<4x128xf32>
    %50 = tpu.matmul %46, %17, %cst_29 {dimension_numbers = #tpu.dot_dimension_numbers<[1], [0], [0], [1], [0, 0, 1, 1], [], []>} : vector<4x32xf32>, vector<32x128xf32>, vector<4x128xf32> -> vector<4x128xf32>
    %51 = arith.addf %49, %50 : vector<4x128xf32>
    %cst_30 = arith.constant 5.000000e-01 : f32
    %52 = vector.broadcast %cst_30 : f32 to vector<4x128xf32>
    %53 = arith.mulf %52, %51 : vector<4x128xf32>
    %54 = arith.select %23, %51, %53 : vector<4x128xi1>, vector<4x128xf32>
    %55 = math.tanh %54 : vector<4x128xf32>
    %cst_31 = arith.constant 1.000000e+00 : f32
    %56 = vector.broadcast %cst_31 : f32 to vector<4x128xf32>
    %57 = arith.addf %55, %56 : vector<4x128xf32>
    %cst_32 = arith.constant 5.000000e-01 : f32
    %58 = vector.broadcast %cst_32 : f32 to vector<4x128xf32>
    %59 = arith.mulf %58, %57 : vector<4x128xf32>
    %60 = arith.select %23, %55, %59 : vector<4x128xi1>, vector<4x128xf32>
    %61 = vector.extract_strided_slice %60 {offsets = [0, 0], sizes = [4, 32], strides = [1, 1]} : vector<4x128xf32> to vector<4x32xf32>
    %62 = vector.extract_strided_slice %60 {offsets = [0, 32], sizes = [4, 32], strides = [1, 1]} : vector<4x128xf32> to vector<4x32xf32>
    %63 = vector.extract_strided_slice %60 {offsets = [0, 64], sizes = [4, 32], strides = [1, 1]} : vector<4x128xf32> to vector<4x32xf32>
    %64 = vector.extract_strided_slice %60 {offsets = [0, 96], sizes = [4, 32], strides = [1, 1]} : vector<4x128xf32> to vector<4x32xf32>
    %65 = arith.mulf %62, %44 : vector<4x32xf32>
    %66 = arith.mulf %61, %63 : vector<4x32xf32>
    %67 = arith.addf %65, %66 : vector<4x32xf32>
    %68 = math.tanh %67 : vector<4x32xf32>
    %69 = arith.mulf %64, %68 : vector<4x32xf32>
    %c4_33 = arith.constant 4 : index
    %c0_34 = arith.constant 0 : index
    %70 = vector.load %arg12[%c4_33, %c0_34] : memref<32x32xf32, #tpu.memory_space<vmem>>, vector<4x32xf32>
    tpu.vector_store %arg12[%c4_33, %c0_34], %69 {strides = array<i32>} : memref<32x32xf32, #tpu.memory_space<vmem>>, vector<4x32xf32>,
    %c4_35 = arith.constant 4 : index
    %c0_36 = arith.constant 0 : index
    %71 = vector.load %arg13[%c4_35, %c0_36] : memref<32x32xf32, #tpu.memory_space<vmem>>, vector<4x32xf32>
    tpu.vector_store %arg13[%c4_35, %c0_36], %67 {strides = array<i32>} : memref<32x32xf32, #tpu.memory_space<vmem>>, vector<4x32xf32>,
    %c8 = arith.constant 8 : index
    %c0_37 = arith.constant 0 : index
    %72 = vector.load %arg11[%c8, %c0_37] : memref<32x128xf32, #tpu.memory_space<vmem>>, vector<4x128xf32>
    %cst_38 = arith.constant dense<0.000000e+00> : vector<4x128xf32>
    %73 = tpu.matmul %69, %17, %cst_38 {dimension_numbers = #tpu.dot_dimension_numbers<[1], [0], [0], [1], [0, 0, 1, 1], [], []>} : vector<4x32xf32>, vector<32x128xf32>, vector<4x128xf32> -> vector<4x128xf32>
    %74 = arith.addf %72, %73 : vector<4x128xf32>
    %cst_39 = arith.constant 5.000000e-01 : f32
    %75 = vector.broadcast %cst_39 : f32 to vector<4x128xf32>
    %76 = arith.mulf %75, %74 : vector<4x128xf32>
    %77 = arith.select %23, %74, %76 : vector<4x128xi1>, vector<4x128xf32>
    %78 = math.tanh %77 : vector<4x128xf32>
    %cst_40 = arith.constant 1.000000e+00 : f32
    %79 = vector.broadcast %cst_40 : f32 to vector<4x128xf32>
    %80 = arith.addf %78, %79 : vector<4x128xf32>
    %cst_41 = arith.constant 5.000000e-01 : f32
    %81 = vector.broadcast %cst_41 : f32 to vector<4x128xf32>
    %82 = arith.mulf %81, %80 : vector<4x128xf32>
    %83 = arith.select %23, %78, %82 : vector<4x128xi1>, vector<4x128xf32>
    %84 = vector.extract_strided_slice %83 {offsets = [0, 0], sizes = [4, 32], strides = [1, 1]} : vector<4x128xf32> to vector<4x32xf32>
    %85 = vector.extract_strided_slice %83 {offsets = [0, 32], sizes = [4, 32], strides = [1, 1]} : vector<4x128xf32> to vector<4x32xf32>
    %86 = vector.extract_strided_slice %83 {offsets = [0, 64], sizes = [4, 32], strides = [1, 1]} : vector<4x128xf32> to vector<4x32xf32>
    %87 = vector.extract_strided_slice %83 {offsets = [0, 96], sizes = [4, 32], strides = [1, 1]} : vector<4x128xf32> to vector<4x32xf32>
    %88 = arith.mulf %85, %67 : vector<4x32xf32>
    %89 = arith.mulf %84, %86 : vector<4x32xf32>
    %90 = arith.addf %88, %89 : vector<4x32xf32>
    %91 = math.tanh %90 : vector<4x32xf32>
    %92 = arith.mulf %87, %91 : vector<4x32xf32>
    %c8_42 = arith.constant 8 : index
    %c0_43 = arith.constant 0 : index
    %93 = vector.load %arg12[%c8_42, %c0_43] : memref<32x32xf32, #tpu.memory_space<vmem>>, vector<4x32xf32>
    tpu.vector_store %arg12[%c8_42, %c0_43], %92 {strides = array<i32>} : memref<32x32xf32, #tpu.memory_space<vmem>>, vector<4x32xf32>,
    %c8_44 = arith.constant 8 : index
    %c0_45 = arith.constant 0 : index
    %94 = vector.load %arg13[%c8_44, %c0_45] : memref<32x32xf32, #tpu.memory_space<vmem>>, vector<4x32xf32>
    tpu.vector_store %arg13[%c8_44, %c0_45], %90 {strides = array<i32>} : memref<32x32xf32, #tpu.memory_space<vmem>>, vector<4x32xf32>,
    %c12 = arith.constant 12 : index
    %c0_46 = arith.constant 0 : index
    %95 = vector.load %arg11[%c12, %c0_46] : memref<32x128xf32, #tpu.memory_space<vmem>>, vector<4x128xf32>
    %cst_47 = arith.constant dense<0.000000e+00> : vector<4x128xf32>
    %96 = tpu.matmul %92, %17, %cst_47 {dimension_numbers = #tpu.dot_dimension_numbers<[1], [0], [0], [1], [0, 0, 1, 1], [], []>} : vector<4x32xf32>, vector<32x128xf32>, vector<4x128xf32> -> vector<4x128xf32>
    %97 = arith.addf %95, %96 : vector<4x128xf32>
    %cst_48 = arith.constant 5.000000e-01 : f32
    %98 = vector.broadcast %cst_48 : f32 to vector<4x128xf32>
    %99 = arith.mulf %98, %97 : vector<4x128xf32>
    %100 = arith.select %23, %97, %99 : vector<4x128xi1>, vector<4x128xf32>
    %101 = math.tanh %100 : vector<4x128xf32>
    %cst_49 = arith.constant 1.000000e+00 : f32
    %102 = vector.broadcast %cst_49 : f32 to vector<4x128xf32>
    %103 = arith.addf %101, %102 : vector<4x128xf32>
    %cst_50 = arith.constant 5.000000e-01 : f32
    %104 = vector.broadcast %cst_50 : f32 to vector<4x128xf32>
    %105 = arith.mulf %104, %103 : vector<4x128xf32>
    %106 = arith.select %23, %101, %105 : vector<4x128xi1>, vector<4x128xf32>
    %107 = vector.extract_strided_slice %106 {offsets = [0, 0], sizes = [4, 32], strides = [1, 1]} : vector<4x128xf32> to vector<4x32xf32>
    %108 = vector.extract_strided_slice %106 {offsets = [0, 32], sizes = [4, 32], strides = [1, 1]} : vector<4x128xf32> to vector<4x32xf32>
    %109 = vector.extract_strided_slice %106 {offsets = [0, 64], sizes = [4, 32], strides = [1, 1]} : vector<4x128xf32> to vector<4x32xf32>
    %110 = vector.extract_strided_slice %106 {offsets = [0, 96], sizes = [4, 32], strides = [1, 1]} : vector<4x128xf32> to vector<4x32xf32>
    %111 = arith.mulf %108, %90 : vector<4x32xf32>
    %112 = arith.mulf %107, %109 : vector<4x32xf32>
    %113 = arith.addf %111, %112 : vector<4x32xf32>
    %114 = math.tanh %113 : vector<4x32xf32>
    %115 = arith.mulf %110, %114 : vector<4x32xf32>
    %c12_51 = arith.constant 12 : index
    %c0_52 = arith.constant 0 : index
    %116 = vector.load %arg12[%c12_51, %c0_52] : memref<32x32xf32, #tpu.memory_space<vmem>>, vector<4x32xf32>
    tpu.vector_store %arg12[%c12_51, %c0_52], %115 {strides = array<i32>} : memref<32x32xf32, #tpu.memory_space<vmem>>, vector<4x32xf32>,
    %c12_53 = arith.constant 12 : index
    %c0_54 = arith.constant 0 : index
    %117 = vector.load %arg13[%c12_53, %c0_54] : memref<32x32xf32, #tpu.memory_space<vmem>>, vector<4x32xf32>
    tpu.vector_store %arg13[%c12_53, %c0_54], %113 {strides = array<i32>} : memref<32x32xf32, #tpu.memory_space<vmem>>, vector<4x32xf32>,
    %c16 = arith.constant 16 : index
    %c0_55 = arith.constant 0 : index
    %118 = vector.load %arg11[%c16, %c0_55] : memref<32x128xf32, #tpu.memory_space<vmem>>, vector<4x128xf32>
    %cst_56 = arith.constant dense<0.000000e+00> : vector<4x128xf32>
    %119 = tpu.matmul %115, %17, %cst_56 {dimension_numbers = #tpu.dot_dimension_numbers<[1], [0], [0], [1], [0, 0, 1, 1], [], []>} : vector<4x32xf32>, vector<32x128xf32>, vector<4x128xf32> -> vector<4x128xf32>
    %120 = arith.addf %118, %119 : vector<4x128xf32>
    %cst_57 = arith.constant 5.000000e-01 : f32
    %121 = vector.broadcast %cst_57 : f32 to vector<4x128xf32>
    %122 = arith.mulf %121, %120 : vector<4x128xf32>
    %123 = arith.select %23, %120, %122 : vector<4x128xi1>, vector<4x128xf32>
    %124 = math.tanh %123 : vector<4x128xf32>
    %cst_58 = arith.constant 1.000000e+00 : f32
    %125 = vector.broadcast %cst_58 : f32 to vector<4x128xf32>
    %126 = arith.addf %124, %125 : vector<4x128xf32>
    %cst_59 = arith.constant 5.000000e-01 : f32
    %127 = vector.broadcast %cst_59 : f32 to vector<4x128xf32>
    %128 = arith.mulf %127, %126 : vector<4x128xf32>
    %129 = arith.select %23, %124, %128 : vector<4x128xi1>, vector<4x128xf32>
    %130 = vector.extract_strided_slice %129 {offsets = [0, 0], sizes = [4, 32], strides = [1, 1]} : vector<4x128xf32> to vector<4x32xf32>
    %131 = vector.extract_strided_slice %129 {offsets = [0, 32], sizes = [4, 32], strides = [1, 1]} : vector<4x128xf32> to vector<4x32xf32>
    %132 = vector.extract_strided_slice %129 {offsets = [0, 64], sizes = [4, 32], strides = [1, 1]} : vector<4x128xf32> to vector<4x32xf32>
    %133 = vector.extract_strided_slice %129 {offsets = [0, 96], sizes = [4, 32], strides = [1, 1]} : vector<4x128xf32> to vector<4x32xf32>
    %134 = arith.mulf %131, %113 : vector<4x32xf32>
    %135 = arith.mulf %130, %132 : vector<4x32xf32>
    %136 = arith.addf %134, %135 : vector<4x32xf32>
    %137 = math.tanh %136 : vector<4x32xf32>
    %138 = arith.mulf %133, %137 : vector<4x32xf32>
    %c16_60 = arith.constant 16 : index
    %c0_61 = arith.constant 0 : index
    %139 = vector.load %arg12[%c16_60, %c0_61] : memref<32x32xf32, #tpu.memory_space<vmem>>, vector<4x32xf32>
    tpu.vector_store %arg12[%c16_60, %c0_61], %138 {strides = array<i32>} : memref<32x32xf32, #tpu.memory_space<vmem>>, vector<4x32xf32>,
    %c16_62 = arith.constant 16 : index
    %c0_63 = arith.constant 0 : index
    %140 = vector.load %arg13[%c16_62, %c0_63] : memref<32x32xf32, #tpu.memory_space<vmem>>, vector<4x32xf32>
    tpu.vector_store %arg13[%c16_62, %c0_63], %136 {strides = array<i32>} : memref<32x32xf32, #tpu.memory_space<vmem>>, vector<4x32xf32>,
    %c20 = arith.constant 20 : index
    %c0_64 = arith.constant 0 : index
    %141 = vector.load %arg11[%c20, %c0_64] : memref<32x128xf32, #tpu.memory_space<vmem>>, vector<4x128xf32>
    %cst_65 = arith.constant dense<0.000000e+00> : vector<4x128xf32>
    %142 = tpu.matmul %138, %17, %cst_65 {dimension_numbers = #tpu.dot_dimension_numbers<[1], [0], [0], [1], [0, 0, 1, 1], [], []>} : vector<4x32xf32>, vector<32x128xf32>, vector<4x128xf32> -> vector<4x128xf32>
    %143 = arith.addf %141, %142 : vector<4x128xf32>
    %cst_66 = arith.constant 5.000000e-01 : f32
    %144 = vector.broadcast %cst_66 : f32 to vector<4x128xf32>
    %145 = arith.mulf %144, %143 : vector<4x128xf32>
    %146 = arith.select %23, %143, %145 : vector<4x128xi1>, vector<4x128xf32>
    %147 = math.tanh %146 : vector<4x128xf32>
    %cst_67 = arith.constant 1.000000e+00 : f32
    %148 = vector.broadcast %cst_67 : f32 to vector<4x128xf32>
    %149 = arith.addf %147, %148 : vector<4x128xf32>
    %cst_68 = arith.constant 5.000000e-01 : f32
    %150 = vector.broadcast %cst_68 : f32 to vector<4x128xf32>
    %151 = arith.mulf %150, %149 : vector<4x128xf32>
    %152 = arith.select %23, %147, %151 : vector<4x128xi1>, vector<4x128xf32>
    %153 = vector.extract_strided_slice %152 {offsets = [0, 0], sizes = [4, 32], strides = [1, 1]} : vector<4x128xf32> to vector<4x32xf32>
    %154 = vector.extract_strided_slice %152 {offsets = [0, 32], sizes = [4, 32], strides = [1, 1]} : vector<4x128xf32> to vector<4x32xf32>
    %155 = vector.extract_strided_slice %152 {offsets = [0, 64], sizes = [4, 32], strides = [1, 1]} : vector<4x128xf32> to vector<4x32xf32>
    %156 = vector.extract_strided_slice %152 {offsets = [0, 96], sizes = [4, 32], strides = [1, 1]} : vector<4x128xf32> to vector<4x32xf32>
    %157 = arith.mulf %154, %136 : vector<4x32xf32>
    %158 = arith.mulf %153, %155 : vector<4x32xf32>
    %159 = arith.addf %157, %158 : vector<4x32xf32>
    %160 = math.tanh %159 : vector<4x32xf32>
    %161 = arith.mulf %156, %160 : vector<4x32xf32>
    %c20_69 = arith.constant 20 : index
    %c0_70 = arith.constant 0 : index
    %162 = vector.load %arg12[%c20_69, %c0_70] : memref<32x32xf32, #tpu.memory_space<vmem>>, vector<4x32xf32>
    tpu.vector_store %arg12[%c20_69, %c0_70], %161 {strides = array<i32>} : memref<32x32xf32, #tpu.memory_space<vmem>>, vector<4x32xf32>,
    %c20_71 = arith.constant 20 : index
    %c0_72 = arith.constant 0 : index
    %163 = vector.load %arg13[%c20_71, %c0_72] : memref<32x32xf32, #tpu.memory_space<vmem>>, vector<4x32xf32>
    tpu.vector_store %arg13[%c20_71, %c0_72], %159 {strides = array<i32>} : memref<32x32xf32, #tpu.memory_space<vmem>>, vector<4x32xf32>,
    %c24 = arith.constant 24 : index
    %c0_73 = arith.constant 0 : index
    %164 = vector.load %arg11[%c24, %c0_73] : memref<32x128xf32, #tpu.memory_space<vmem>>, vector<4x128xf32>
    %cst_74 = arith.constant dense<0.000000e+00> : vector<4x128xf32>
    %165 = tpu.matmul %161, %17, %cst_74 {dimension_numbers = #tpu.dot_dimension_numbers<[1], [0], [0], [1], [0, 0, 1, 1], [], []>} : vector<4x32xf32>, vector<32x128xf32>, vector<4x128xf32> -> vector<4x128xf32>
    %166 = arith.addf %164, %165 : vector<4x128xf32>
    %cst_75 = arith.constant 5.000000e-01 : f32
    %167 = vector.broadcast %cst_75 : f32 to vector<4x128xf32>
    %168 = arith.mulf %167, %166 : vector<4x128xf32>
    %169 = arith.select %23, %166, %168 : vector<4x128xi1>, vector<4x128xf32>
    %170 = math.tanh %169 : vector<4x128xf32>
    %cst_76 = arith.constant 1.000000e+00 : f32
    %171 = vector.broadcast %cst_76 : f32 to vector<4x128xf32>
    %172 = arith.addf %170, %171 : vector<4x128xf32>
    %cst_77 = arith.constant 5.000000e-01 : f32
    %173 = vector.broadcast %cst_77 : f32 to vector<4x128xf32>
    %174 = arith.mulf %173, %172 : vector<4x128xf32>
    %175 = arith.select %23, %170, %174 : vector<4x128xi1>, vector<4x128xf32>
    %176 = vector.extract_strided_slice %175 {offsets = [0, 0], sizes = [4, 32], strides = [1, 1]} : vector<4x128xf32> to vector<4x32xf32>
    %177 = vector.extract_strided_slice %175 {offsets = [0, 32], sizes = [4, 32], strides = [1, 1]} : vector<4x128xf32> to vector<4x32xf32>
    %178 = vector.extract_strided_slice %175 {offsets = [0, 64], sizes = [4, 32], strides = [1, 1]} : vector<4x128xf32> to vector<4x32xf32>
    %179 = vector.extract_strided_slice %175 {offsets = [0, 96], sizes = [4, 32], strides = [1, 1]} : vector<4x128xf32> to vector<4x32xf32>
    %180 = arith.mulf %177, %159 : vector<4x32xf32>
    %181 = arith.mulf %176, %178 : vector<4x32xf32>
    %182 = arith.addf %180, %181 : vector<4x32xf32>
    %183 = math.tanh %182 : vector<4x32xf32>
    %184 = arith.mulf %179, %183 : vector<4x32xf32>
    %c24_78 = arith.constant 24 : index
    %c0_79 = arith.constant 0 : index
    %185 = vector.load %arg12[%c24_78, %c0_79] : memref<32x32xf32, #tpu.memory_space<vmem>>, vector<4x32xf32>
    tpu.vector_store %arg12[%c24_78, %c0_79], %184 {strides = array<i32>} : memref<32x32xf32, #tpu.memory_space<vmem>>, vector<4x32xf32>,
    %c24_80 = arith.constant 24 : index
    %c0_81 = arith.constant 0 : index
    %186 = vector.load %arg13[%c24_80, %c0_81] : memref<32x32xf32, #tpu.memory_space<vmem>>, vector<4x32xf32>
    tpu.vector_store %arg13[%c24_80, %c0_81], %182 {strides = array<i32>} : memref<32x32xf32, #tpu.memory_space<vmem>>, vector<4x32xf32>,
    %c28 = arith.constant 28 : index
    %c0_82 = arith.constant 0 : index
    %187 = vector.load %arg11[%c28, %c0_82] : memref<32x128xf32, #tpu.memory_space<vmem>>, vector<4x128xf32>
    %cst_83 = arith.constant dense<0.000000e+00> : vector<4x128xf32>
    %188 = tpu.matmul %184, %17, %cst_83 {dimension_numbers = #tpu.dot_dimension_numbers<[1], [0], [0], [1], [0, 0, 1, 1], [], []>} : vector<4x32xf32>, vector<32x128xf32>, vector<4x128xf32> -> vector<4x128xf32>
    %189 = arith.addf %187, %188 : vector<4x128xf32>
    %cst_84 = arith.constant 5.000000e-01 : f32
    %190 = vector.broadcast %cst_84 : f32 to vector<4x128xf32>
    %191 = arith.mulf %190, %189 : vector<4x128xf32>
    %192 = arith.select %23, %189, %191 : vector<4x128xi1>, vector<4x128xf32>
    %193 = math.tanh %192 : vector<4x128xf32>
    %cst_85 = arith.constant 1.000000e+00 : f32
    %194 = vector.broadcast %cst_85 : f32 to vector<4x128xf32>
    %195 = arith.addf %193, %194 : vector<4x128xf32>
    %cst_86 = arith.constant 5.000000e-01 : f32
    %196 = vector.broadcast %cst_86 : f32 to vector<4x128xf32>
    %197 = arith.mulf %196, %195 : vector<4x128xf32>
    %198 = arith.select %23, %193, %197 : vector<4x128xi1>, vector<4x128xf32>
    %199 = vector.extract_strided_slice %198 {offsets = [0, 0], sizes = [4, 32], strides = [1, 1]} : vector<4x128xf32> to vector<4x32xf32>
    %200 = vector.extract_strided_slice %198 {offsets = [0, 32], sizes = [4, 32], strides = [1, 1]} : vector<4x128xf32> to vector<4x32xf32>
    %201 = vector.extract_strided_slice %198 {offsets = [0, 64], sizes = [4, 32], strides = [1, 1]} : vector<4x128xf32> to vector<4x32xf32>
    %202 = vector.extract_strided_slice %198 {offsets = [0, 96], sizes = [4, 32], strides = [1, 1]} : vector<4x128xf32> to vector<4x32xf32>
    %203 = arith.mulf %200, %182 : vector<4x32xf32>
    %204 = arith.mulf %199, %201 : vector<4x32xf32>
    %205 = arith.addf %203, %204 : vector<4x32xf32>
    %206 = math.tanh %205 : vector<4x32xf32>
    %207 = arith.mulf %202, %206 : vector<4x32xf32>
    %c28_87 = arith.constant 28 : index
    %c0_88 = arith.constant 0 : index
    %208 = vector.load %arg12[%c28_87, %c0_88] : memref<32x32xf32, #tpu.memory_space<vmem>>, vector<4x32xf32>
    tpu.vector_store %arg12[%c28_87, %c0_88], %207 {strides = array<i32>} : memref<32x32xf32, #tpu.memory_space<vmem>>, vector<4x32xf32>,
    %c28_89 = arith.constant 28 : index
    %c0_90 = arith.constant 0 : index
    %209 = vector.load %arg13[%c28_89, %c0_90] : memref<32x32xf32, #tpu.memory_space<vmem>>, vector<4x32xf32>
    tpu.vector_store %arg13[%c28_89, %c0_90], %205 {strides = array<i32>} : memref<32x32xf32, #tpu.memory_space<vmem>>, vector<4x32xf32>,
    %cst_91 = arith.constant 0.000000e+00 : f32
    %210 = vector.broadcast %cst_91 : f32 to vector<4x32xf32>
    %c0_92 = arith.constant 0 : index
    %c0_93 = arith.constant 0 : index
    %211 = vector.load %arg12[%c0_92, %c0_93] : memref<32x32xf32, #tpu.memory_space<vmem>>, vector<28x32xf32>
    %212 = tpu.concatenate %210, %211 in 0 : vector<4x32xf32>, vector<28x32xf32> -> vector<32x32xf32>
    %c0_94 = arith.constant 0 : index
    %c0_95 = arith.constant 0 : index
    %c0_96 = arith.constant 0 : index
    %213 = vector.load %arg10[%c0_94, %c0_95, %c0_96] : memref<2x32x32xf32, #tpu.memory_space<vmem>>, vector<1x32x32xf32>
    %214 = vector.shape_cast %213 : vector<1x32x32xf32> to vector<32x32xf32>
    %215 = vector.shape_cast %212 : vector<32x32xf32> to vector<1x32x32xf32>
    tpu.vector_store %arg10[%c0_94, %c0_95, %c0_96], %215 {strides = array<i32>} : memref<2x32x32xf32, #tpu.memory_space<vmem>>, vector<1x32x32xf32>,
    %c0_97 = arith.constant 0 : index
    %c0_98 = arith.constant 0 : index
    %216 = vector.load %arg13[%c0_97, %c0_98] : memref<32x32xf32, #tpu.memory_space<vmem>>, vector<28x32xf32>
    %217 = tpu.concatenate %210, %216 in 0 : vector<4x32xf32>, vector<28x32xf32> -> vector<32x32xf32>
    %c1 = arith.constant 1 : index
    %c0_99 = arith.constant 0 : index
    %c0_100 = arith.constant 0 : index
    %218 = vector.load %arg10[%c1, %c0_99, %c0_100] : memref<2x32x32xf32, #tpu.memory_space<vmem>>, vector<1x32x32xf32>
    %219 = vector.shape_cast %218 : vector<1x32x32xf32> to vector<32x32xf32>
    %220 = vector.shape_cast %217 : vector<32x32xf32> to vector<1x32x32xf32>
    tpu.vector_store %arg10[%c1, %c0_99, %c0_100], %220 {strides = array<i32>} : memref<2x32x32xf32, #tpu.memory_space<vmem>>, vector<1x32x32xf32>,
    %c0_101 = arith.constant 0 : index
    %c0_102 = arith.constant 0 : index
    %221 = vector.load %arg12[%c0_101, %c0_102] : memref<32x32xf32, #tpu.memory_space<vmem>>, vector<32x32xf32>
    %cst_103 = arith.constant 0.000000e+00 : f32
    %222 = vector.broadcast %cst_103 : f32 to vector<32x32xf32>
    %223 = arith.cmpf ogt, %221, %222 : vector<32x32xf32>
    %cst_104 = arith.constant 0.00999999977 : f32
    %224 = vector.broadcast %cst_104 : f32 to vector<32x32xf32>
    %225 = arith.mulf %224, %221 : vector<32x32xf32>
    %226 = arith.select %223, %221, %225 : vector<32x32xi1>, vector<32x32xf32>
    %c0_105 = arith.constant 0 : index
    %c0_106 = arith.constant 0 : index
    %227 = vector.load %arg7[%c0_105, %c0_106] : memref<32x16xf32, #tpu.memory_space<vmem>>, vector<32x16xf32>
    %cst_107 = arith.constant dense<0.000000e+00> : vector<32x16xf32>
    %228 = tpu.matmul %226, %227, %cst_107 {dimension_numbers = #tpu.dot_dimension_numbers<[1], [0], [0], [1], [0, 0, 1, 1], [], []>} : vector<32x32xf32>, vector<32x16xf32>, vector<32x16xf32> -> vector<32x16xf32>
    %c0_108 = arith.constant 0 : index
    %c0_109 = arith.constant 0 : index
    %229 = vector.load %arg8[%c0_108, %c0_109] : memref<1x16xf32, #tpu.memory_space<vmem>>, vector<1x16xf32>
    %230 = vector.broadcast %229 : vector<1x16xf32> to vector<32x16xf32>
    %231 = arith.addf %228, %230 : vector<32x16xf32>
    %232 = tpu.iota {dimensions = array<i32: 1>} : vector<32x16xi32>
    %c8_i32 = arith.constant 8 : i32
    %233 = vector.broadcast %c8_i32 : i32 to vector<32x16xi32>
    %234 = arith.cmpi slt, %232, %233 : vector<32x16xi32>
    %235 = math.tanh %231 : vector<32x16xf32>
    %cst_110 = arith.constant 2.000000e+01 : f32
    %236 = vector.broadcast %cst_110 : f32 to vector<32x16xf32>
    %237 = arith.cmpf ogt, %231, %236 : vector<32x16xf32>
    %cst_111 = arith.constant 2.000000e+01 : f32
    %238 = vector.broadcast %cst_111 : f32 to vector<32x16xf32>
    %239 = arith.minimumf %231, %238 : vector<32x16xf32>
    %240 = math.exp %239 : vector<32x16xf32>
    %241 = math.log1p %240 : vector<32x16xf32>
    %242 = arith.select %237, %231, %241 : vector<32x16xi1>, vector<32x16xf32>
    %cst_112 = arith.constant 9.99999997E-7 : f32
    %243 = vector.broadcast %cst_112 : f32 to vector<32x16xf32>
    %244 = arith.addf %242, %243 : vector<32x16xf32>
    %245 = arith.select %234, %235, %244 : vector<32x16xi1>, vector<32x16xf32>
    %c0_113 = arith.constant 0 : index
    %c0_114 = arith.constant 0 : index
    %246 = vector.load %arg9[%c0_113, %c0_114] : memref<32x16xf32, #tpu.memory_space<vmem>>, vector<32x16xf32>
    tpu.vector_store %arg9[%c0_113, %c0_114], %245 {strides = array<i32>} : memref<32x16xf32, #tpu.memory_space<vmem>>, vector<32x16xf32>,
    return
  }
  func.func @transform_0(%arg0: i32) -> (i32, i32) {
    %c0_i32 = arith.constant 0 : i32
    %c0_i32_0 = arith.constant 0 : i32
    %c0_i32_1 = arith.constant 0 : i32
    return %c0_i32, %c0_i32_0 : i32, i32
  }
  func.func @transform_1(%arg0: i32) -> (i32, i32) {
    %c0_i32 = arith.constant 0 : i32
    %c0_i32_0 = arith.constant 0 : i32
    %c0_i32_1 = arith.constant 0 : i32
    return %c0_i32, %c0_i32_0 : i32, i32
  }
  func.func @transform_2(%arg0: i32) -> (i32, i32) {
    %c0_i32 = arith.constant 0 : i32
    %c0_i32_0 = arith.constant 0 : i32
    %c0_i32_1 = arith.constant 0 : i32
    return %c0_i32, %c0_i32_0 : i32, i32
  }
  func.func @transform_3(%arg0: i32) -> (i32, i32) {
    %c0_i32 = arith.constant 0 : i32
    %c0_i32_0 = arith.constant 0 : i32
    %c0_i32_1 = arith.constant 0 : i32
    return %c0_i32, %c0_i32_0 : i32, i32
  }
  func.func @transform_4(%arg0: i32) -> (i32, i32) {
    %c0_i32 = arith.constant 0 : i32
    %c0_i32_0 = arith.constant 0 : i32
    %c0_i32_1 = arith.constant 0 : i32
    return %c0_i32, %c0_i32_0 : i32, i32
  }
  func.func @transform_5(%arg0: i32) -> (i32, i32) {
    %c0_i32 = arith.constant 0 : i32
    %c0_i32_0 = arith.constant 0 : i32
    %c0_i32_1 = arith.constant 0 : i32
    return %c0_i32, %c0_i32_0 : i32, i32
  }
  func.func @transform_6(%arg0: i32) -> (i32, i32) {
    %c0_i32 = arith.constant 0 : i32
    %c0_i32_0 = arith.constant 0 : i32
    %c0_i32_1 = arith.constant 0 : i32
    return %c0_i32, %c0_i32_0 : i32, i32
  }
  func.func @transform_7(%arg0: i32) -> (i32, i32) {
    %c0_i32 = arith.constant 0 : i32
    %c0_i32_0 = arith.constant 0 : i32
    %c0_i32_1 = arith.constant 0 : i32
    return %c0_i32, %c0_i32_0 : i32, i32
  }
  func.func @transform_8(%arg0: i32) -> (i32, i32) {
    %c0_i32 = arith.constant 0 : i32
    %c0_i32_0 = arith.constant 0 : i32
    %c0_i32_1 = arith.constant 0 : i32
    return %c0_i32, %c0_i32_0 : i32, i32
  }
  func.func @transform_9(%arg0: i32) -> (i32, i32, i32) {
    %c0_i32 = arith.constant 0 : i32
    %c0_i32_0 = arith.constant 0 : i32
    %c0_i32_1 = arith.constant 0 : i32
    %c0_i32_2 = arith.constant 0 : i32
    return %c0_i32, %c0_i32_0, %c0_i32_1 : i32, i32, i32
  }
}

</mosaic_0001>

<llo_original>
// kernel: gaussian_lstm_policy_forward.1
$region0: #{gaussian_lstm_policy_forward.1}
  #allocation0 [shape = 'u32[]', space=smem, size = 0x4, offset = 0x4, fixed_abs, tag = 'smem constant byte address 0x4 - core index']
  #allocation1 [shape = 'u32[144,128]{1,0:T(1,128)}', space=vmem, size = 0x12000, scoped, tag = 'internal scratch']
  #allocation2 [shape = 'f32[32,128]{1,0:T(8,128)}', space=vmem, size = 0x4000, scoped, tag = 'scratch operand']
  #allocation3 [shape = 'f32[32,32]{1,0:T(8,128)}', space=vmem, size = 0x4000, scoped, tag = 'scratch operand']
  #allocation4 [shape = 'f32[32,32]{1,0:T(8,128)}', space=vmem, size = 0x4000, scoped, tag = 'scratch operand']
  %s0 = inlined_call_operand.vmem [shape: f32[32,16], index: 0, kind: input, shape index: {}]
  %s1 = inlined_call_operand.vmem [shape: f32[16,32], index: 1, kind: input, shape index: {}]
  %s2 = inlined_call_operand.vmem [shape: f32[1,32], index: 2, kind: input, shape index: {}]
  %s3 = inlined_call_operand.vmem [shape: f32[32,128], index: 3, kind: input, shape index: {}]
  %s4 = inlined_call_operand.vmem [shape: f32[32,128], index: 4, kind: input, shape index: {}]
  %s5 = inlined_call_operand.vmem [shape: f32[1,128], index: 5, kind: input, shape index: {}]
  %s6 = inlined_call_operand.vmem [shape: f32[32,16], index: 6, kind: input, shape index: {}]
  %s7 = inlined_call_operand.vmem [shape: f32[1,16], index: 7, kind: input, shape index: {}]
  %s8 = inlined_call_operand.vmem [shape: f32[32,16], index: 8, kind: output, shape index: {0}]
  %s9 = inlined_call_operand.vmem [shape: f32[2,32,32], index: 9, kind: output, shape index: {1}]
  %10 = xla_tuple %s8, %s9
  %s11 = sld [smem:[#allocation0]]
  $region50: #{gaussian_lstm_policy_forward.1} parent=0
    _
  %s13 = ssub.s32 1, %s11
  %s14 = scalar_select 0, %s13, %s11
  // Predicated region
  $region2: #{gaussian_lstm_policy_forward.1} parent=0 // pred_check
    _
  $region3: #{gaussian_lstm_policy_forward.1} parent=0 // pred_check_branch
    %16 = sbr.rel (0) target = $region5
  $region4: #{gaussian_lstm_policy_forward.1} parent=0 // pred_region
    _
  $region5: #{gaussian_lstm_policy_forward.1} parent=0 // pred_fallthru
    _
  // Predicated region
  $region6: #{gaussian_lstm_policy_forward.1} parent=0 // pred_check
    _
  $region7: #{gaussian_lstm_policy_forward.1} parent=0 // pred_check_branch
    %18 = sbr.rel (0) target = $region9
  $region8: #{gaussian_lstm_policy_forward.1} parent=0 // pred_region
    _
  $region9: #{gaussian_lstm_policy_forward.1} parent=0 // pred_fallthru
    _
  // Predicated region
  $region10: #{gaussian_lstm_policy_forward.1} parent=0 // pred_check
    _
  $region11: #{gaussian_lstm_policy_forward.1} parent=0 // pred_check_branch
    %20 = sbr.rel (0) target = $region13
  $region12: #{gaussian_lstm_policy_forward.1} parent=0 // pred_region
    _
  $region13: #{gaussian_lstm_policy_forward.1} parent=0 // pred_fallthru
    _
  // Predicated region
  $region14: #{gaussian_lstm_policy_forward.1} parent=0 // pred_check
    _
  $region15: #{gaussian_lstm_policy_forward.1} parent=0 // pred_check_branch
    %22 = sbr.rel (0) target = $region17
  $region16: #{gaussian_lstm_policy_forward.1} parent=0 // pred_region
    _
  $region17: #{gaussian_lstm_policy_forward.1} parent=0 // pred_fallthru
    _
  // Predicated region
  $region18: #{gaussian_lstm_policy_forward.1} parent=0 // pred_check
    _
  $region19: #{gaussian_lstm_policy_forward.1} parent=0 // pred_check_branch
    %24 = sbr.rel (0) target = $region21
  $region20: #{gaussian_lstm_policy_forward.1} parent=0 // pred_region
    _
  $region21: #{gaussian_lstm_policy_forward.1} parent=0 // pred_fallthru
    _
  // Predicated region
  $region22: #{gaussian_lstm_policy_forward.1} parent=0 // pred_check
    _
  $region23: #{gaussian_lstm_policy_forward.1} parent=0 // pred_check_branch
    %26 = sbr.rel (0) target = $region25
  $region24: #{gaussian_lstm_policy_forward.1} parent=0 // pred_region
    _
  $region25: #{gaussian_lstm_policy_forward.1} parent=0 // pred_fallthru
    _
  // Predicated region
  $region26: #{gaussian_lstm_policy_forward.1} parent=0 // pred_check
    _
  $region27: #{gaussian_lstm_policy_forward.1} parent=0 // pred_check_branch
    %28 = sbr.rel (0) target = $region29
  $region28: #{gaussian_lstm_policy_forward.1} parent=0 // pred_region
    _
  $region29: #{gaussian_lstm_policy_forward.1} parent=0 // pred_fallthru
    _
  // Predicated region
  $region30: #{gaussian_lstm_policy_forward.1} parent=0 // pred_check
    _
  $region31: #{gaussian_lstm_policy_forward.1} parent=0 // pred_check_branch
    %30 = sbr.rel (0) target = $region33
  $region32: #{gaussian_lstm_policy_forward.1} parent=0 // pred_region
    _
  $region33: #{gaussian_lstm_policy_forward.1} parent=0 // pred_fallthru
    _
  %v31 = vld [vmem:[%s0] sm:$0xff]
  %v32 = vld [vmem:[%s0 + $0x8] sm:$0xff]
  %v33 = vld [vmem:[%s0 + $0x10] sm:$0xff]
  %v34 = vld [vmem:[%s0 + $0x18] sm:$0xff]
  %v35 = vld [vmem:[%s1] sm:$0xff]
  %v36 = vld [vmem:[%s1 + $0x8] sm:$0xff]
  %v37 = vld [vmem:[%s2] sm:$0x1]
  %v39 = vlaneseq
  %v40 = vshrl.u32 %v39, 7
  %v41 = vsub.s32 0, %v40
  %v42 = vrot.slane %v37, %v41
  %vm44 = vcmask 130048
  %v46 = vsel %vm44, %v31, 0
  %v49 = vsel %vm44, %v32, 0
  %v52 = vsel %vm44, %v33, 0
  %v55 = vsel %vm44, %v34, 0
  %57 = vmatprep.subr.mxu0 0.0
  %58 = vmatpush1.msra.mxu0 0.0
  %59 = vmatprep.subr.mxu0 0.0
  %60 = vmatpush1.msra.mxu0 0.0
  %61 = vmatprep.subr.mxu0 0.0
  %62 = vmatpush1.msra.mxu0 0.0
  %63 = vmatprep.subr.mxu0 0.0
  %64 = vmatpush1.msra.mxu0 0.0
  %65 = vmatprep.subr.mxu0 0.0
  %66 = vmatpush1.msra.mxu0 0.0
  %67 = vmatprep.subr.mxu0 0.0
  %68 = vmatpush1.msra.mxu0 0.0
  %69 = vmatprep.subr.mxu0 0.0
  %70 = vmatpush1.msra.mxu0 0.0
  %71 = vmatprep.subr.mxu0 0.0
  %72 = vmatpush1.msra.mxu0 0.0
  %73 = vmatprep.subr.mxu0 0.0
  %74 = vmatpush1.msra.mxu0 0.0
  %75 = vmatprep.subr.mxu0 0.0
  %76 = vmatpush1.msra.mxu0 0.0
  %77 = vmatprep.subr.mxu0 0.0
  %78 = vmatpush1.msra.mxu0 0.0
  %79 = vmatprep.subr.mxu0 0.0
  %80 = vmatpush1.msra.mxu0 0.0
  %81 = vmatprep.subr.mxu0 0.0
  %82 = vmatpush1.msra.mxu0 0.0
  %83 = vmatprep.subr.mxu0 0.0
  %84 = vmatpush1.msra.mxu0 0.0
  %85 = vmatprep.subr.mxu0 0.0
  %86 = vmatpush1.msra.mxu0 %v36
  %87 = vmatprep.subr.mxu0 0.0
  %88 = vmatpush1.msra.mxu0 %v35
  %89 = vmatprep.subr.mxu0 0.0
  %90 = vmatpush2.msra.mxu0 0.0
  %91 = vmatprep.subr.mxu0 0.0
  %92 = vmatpush2.msra.mxu0 0.0
  %93 = vmatprep.subr.mxu0 0.0
  %94 = vmatpush2.msra.mxu0 0.0
  %95 = vmatprep.subr.mxu0 0.0
  %96 = vmatpush2.msra.mxu0 0.0
  %97 = vmatprep.subr.mxu0 0.0
  %98 = vmatpush2.msra.mxu0 0.0
  %99 = vmatprep.subr.mxu0 0.0
  %100 = vmatpush2.msra.mxu0 0.0
  %101 = vmatprep.subr.mxu0 0.0
  %102 = vmatpush2.msra.mxu0 0.0
  %103 = vmatprep.subr.mxu0 0.0
  %104 = vmatpush2.msra.mxu0 0.0
  %105 = vmatprep.subr.mxu0 0.0
  %106 = vmatpush2.msra.mxu0 0.0
  %107 = vmatprep.subr.mxu0 0.0
  %108 = vmatpush2.msra.mxu0 0.0
  %109 = vmatprep.subr.mxu0 0.0
  %110 = vmatpush2.msra.mxu0 0.0
  %111 = vmatprep.subr.mxu0 0.0
  %112 = vmatpush2.msra.mxu0 0.0
  %113 = vmatprep.subr.mxu0 0.0
  %114 = vmatpush2.msra.mxu0 0.0
  %115 = vmatprep.subr.mxu0 0.0
  %116 = vmatpush2.msra.mxu0 0.0
  %117 = vmatprep.subr.mxu0 0.0
  %118 = vmatpush2.msra.mxu0 0.0
  %119 = vmatprep.subr.mxu0 0.0
  %120 = vmatpush2.msra.mxu0 0.0
  %121 = vmatprep.mubr.f32.mxu0 0.0
  %122 = vmatmul.mubr.f32.gmra.mxu0 %v46
  %v123 = vpop.f32.mrf.mxu0
  %v124 = vadd.f32 %v42, %v123
  %v125 = vpop.f32.mrf.mxu0
  %126 = vmatprep.mubr.f32.mxu0 0.0
  %127 = vmatmul.mubr.f32.gmra.mxu0 %v49
  %v128 = vpop.f32.mrf.mxu0
  %v129 = vadd.f32 %v42, %v128
  %v130 = vpop.f32.mrf.mxu0
  %131 = vmatprep.mubr.f32.mxu0 0.0
  %132 = vmatmul.mubr.f32.gmra.mxu0 %v52
  %v133 = vpop.f32.mrf.mxu0
  %v134 = vadd.f32 %v42, %v133
  %v135 = vpop.f32.mrf.mxu0
  %136 = vmatprep.mubr.f32.mxu0 0.0
  %137 = vmatmul.mubr.f32.gmra.mxu0 %v55
  %v138 = vpop.f32.mrf.mxu0
  %v139 = vadd.f32 %v42, %v138
  %v140 = vpop.f32.mrf.mxu0
  %141 = vdwg.mxu0
  %vm142 = vcmp.gt.f32.partialorder %v124, 0.0
  %vm143 = vcmp.gt.f32.partialorder %v129, 0.0
  %vm144 = vcmp.gt.f32.partialorder %v134, 0.0
  %vm145 = vcmp.gt.f32.partialorder %v139, 0.0
  %v146 = vmul.f32 %v124, 0.01
  %v147 = vmul.f32 %v129, 0.01
  %v148 = vmul.f32 %v134, 0.01
  %v149 = vmul.f32 %v139, 0.01
  %v150 = vsel %vm142, %v124, %v146
  %v151 = vsel %vm143, %v129, %v147
  %v152 = vsel %vm144, %v134, %v148
  %v153 = vsel %vm145, %v139, %v149
  %v154 = vld [vmem:[%s3] sm:$0xff]
  %v155 = vld [vmem:[%s3 + $0x8] sm:$0xff]
  %v156 = vld [vmem:[%s3 + $0x10] sm:$0xff]
  %v157 = vld [vmem:[%s3 + $0x18] sm:$0xff]
  %v158 = vld [vmem:[%s5] sm:$0x1]
  %v160 = vlaneseq
  %v161 = vshrl.u32 %v160, 7
  %v162 = vsub.s32 0, %v161
  %v163 = vrot.slane %v158, %v162
  %vm165 = vcmask 261120
  %v167 = vsel %vm165, %v150, 0
  %v170 = vsel %vm165, %v151, 0
  %v173 = vsel %vm165, %v152, 0
  %v176 = vsel %vm165, %v153, 0
  %178 = vmatprep.subr.mxu0 0.0
  %179 = vmatpush1.msra.mxu0 0.0
  %180 = vmatprep.subr.mxu0 0.0
  %181 = vmatpush1.msra.mxu0 0.0
  %182 = vmatprep.subr.mxu0 0.0
  %183 = vmatpush1.msra.mxu0 0.0
  %184 = vmatprep.subr.mxu0 0.0
  %185 = vmatpush1.msra.mxu0 0.0
  %186 = vmatprep.subr.mxu0 0.0
  %187 = vmatpush1.msra.mxu0 0.0
  %188 = vmatprep.subr.mxu0 0.0
  %189 = vmatpush1.msra.mxu0 0.0
  %190 = vmatprep.subr.mxu0 0.0
  %191 = vmatpush1.msra.mxu0 0.0
  %192 = vmatprep.subr.mxu0 0.0
  %193 = vmatpush1.msra.mxu0 0.0
  %194 = vmatprep.subr.mxu0 0.0
  %195 = vmatpush1.msra.mxu0 0.0
  %196 = vmatprep.subr.mxu0 0.0
  %197 = vmatpush1.msra.mxu0 0.0
  %198 = vmatprep.subr.mxu0 0.0
  %199 = vmatpush1.msra.mxu0 0.0
  %200 = vmatprep.subr.mxu0 0.0
  %201 = vmatpush1.msra.mxu0 0.0
  %202 = vmatprep.subr.mxu0 0.0
  %203 = vmatpush1.msra.mxu0 %v157
  %204 = vmatprep.subr.mxu0 0.0
  %205 = vmatpush1.msra.mxu0 %v156
  %206 = vmatprep.subr.mxu0 0.0
  %207 = vmatpush1.msra.mxu0 %v155
  %208 = vmatprep.subr.mxu0 0.0
  %209 = vmatpush1.msra.mxu0 %v154
  %210 = vmatprep.subr.mxu0 0.0
  %211 = vmatpush2.msra.mxu0 0.0
  %212 = vmatprep.subr.mxu0 0.0
  %213 = vmatpush2.msra.mxu0 0.0
  %214 = vmatprep.subr.mxu0 0.0
  %215 = vmatpush2.msra.mxu0 0.0
  %216 = vmatprep.subr.mxu0 0.0
  %217 = vmatpush2.msra.mxu0 0.0
  %218 = vmatprep.subr.mxu0 0.0
  %219 = vmatpush2.msra.mxu0 0.0
  %220 = vmatprep.subr.mxu0 0.0
  %221 = vmatpush2.msra.mxu0 0.0
  %222 = vmatprep.subr.mxu0 0.0
  %223 = vmatpush2.msra.mxu0 0.0
  %224 = vmatprep.subr.mxu0 0.0
  %225 = vmatpush2.msra.mxu0 0.0
  %226 = vmatprep.subr.mxu0 0.0
  %227 = vmatpush2.msra.mxu0 0.0
  %228 = vmatprep.subr.mxu0 0.0
  %229 = vmatpush2.msra.mxu0 0.0
  %230 = vmatprep.subr.mxu0 0.0
  %231 = vmatpush2.msra.mxu0 0.0
  %232 = vmatprep.subr.mxu0 0.0
  %233 = vmatpush2.msra.mxu0 0.0
  %234 = vmatprep.subr.mxu0 0.0
  %235 = vmatpush2.msra.mxu0 0.0
  %236 = vmatprep.subr.mxu0 0.0
  %237 = vmatpush2.msra.mxu0 0.0
  %238 = vmatprep.subr.mxu0 0.0
  %239 = vmatpush2.msra.mxu0 0.0
  %240 = vmatprep.subr.mxu0 0.0
  %241 = vmatpush2.msra.mxu0 0.0
  %242 = vmatprep.mubr.f32.mxu0 0.0
  %243 = vmatmul.mubr.f32.gmra.mxu0 %v167
  %v244 = vpop.f32.mrf.mxu0
  %v245 = vadd.f32 %v163, %v244
  %v246 = vpop.f32.mrf.mxu0
  %247 = vmatprep.mubr.f32.mxu0 0.0
  %248 = vmatmul.mubr.f32.gmra.mxu0 %v170
  %v249 = vpop.f32.mrf.mxu0
  %v250 = vadd.f32 %v163, %v249
  %v251 = vpop.f32.mrf.mxu0
  %252 = vmatprep.mubr.f32.mxu0 0.0
  %253 = vmatmul.mubr.f32.gmra.mxu0 %v173
  %v254 = vpop.f32.mrf.mxu0
  %v255 = vadd.f32 %v163, %v254
  %v256 = vpop.f32.mrf.mxu0
  %257 = vmatprep.mubr.f32.mxu0 0.0
  %258 = vmatmul.mubr.f32.gmra.mxu0 %v176
  %v259 = vpop.f32.mrf.mxu0
  %v260 = vadd.f32 %v163, %v259
  %v261 = vpop.f32.mrf.mxu0
  %262 = vdwg.mxu0
  %263 = vst [vmem:[#allocation2] sm:$0xff] %v245
  %264 = vst [vmem:[#allocation2 + $0x8] sm:$0xff] %v250
  %265 = vst [vmem:[#allocation2 + $0x10] sm:$0xff] %v255
  %266 = vst [vmem:[#allocation2 + $0x18] sm:$0xff] %v260
  %v267 = vld [vmem:[%s4] sm:$0xff]
  %v268 = vld [vmem:[%s4 + $0x8] sm:$0xff]
  %v269 = vld [vmem:[%s4 + $0x10] sm:$0xff]
  %v270 = vld [vmem:[%s4 + $0x18] sm:$0xff]
  %v271 = vlaneseq
  %v272 = vand.u32 %v271, 127
  %vm273 = vcmp.ge.s32.totalorder %v272, 64
  %vm274 = vcmp.lt.s32.totalorder %v272, 96
  %vm275 = vmand %vm273, %vm274
  %v276 = vld [vmem:[#allocation2] sm:$0xf]
  %v278 = vsel %vm165, 0.0, 0
  %280 = vmatprep.subr.mxu0 0.0
  %281 = vmatpush1.msra.mxu0 0.0
  %282 = vmatprep.subr.mxu0 0.0
  %283 = vmatpush1.msra.mxu0 0.0
  %284 = vmatprep.subr.mxu0 0.0
  %285 = vmatpush1.msra.mxu0 0.0
  %286 = vmatprep.subr.mxu0 0.0
  %287 = vmatpush1.msra.mxu0 0.0
  %288 = vmatprep.subr.mxu0 0.0
  %289 = vmatpush1.msra.mxu0 0.0
  %290 = vmatprep.subr.mxu0 0.0
  %291 = vmatpush1.msra.mxu0 0.0
  %292 = vmatprep.subr.mxu0 0.0
  %293 = vmatpush1.msra.mxu0 0.0
  %294 = vmatprep.subr.mxu0 0.0
  %295 = vmatpush1.msra.mxu0 0.0
  %296 = vmatprep.subr.mxu0 0.0
  %297 = vmatpush1.msra.mxu0 0.0
  %298 = vmatprep.subr.mxu0 0.0
  %299 = vmatpush1.msra.mxu0 0.0
  %300 = vmatprep.subr.mxu0 0.0
  %301 = vmatpush1.msra.mxu0 0.0
  %302 = vmatprep.subr.mxu0 0.0
  %303 = vmatpush1.msra.mxu0 0.0
  %304 = vmatprep.subr.mxu0 0.0
  %305 = vmatpush1.msra.mxu0 %v270
  %306 = vmatprep.subr.mxu0 0.0
  %307 = vmatpush1.msra.mxu0 %v269
  %308 = vmatprep.subr.mxu0 0.0
  %309 = vmatpush1.msra.mxu0 %v268
  %310 = vmatprep.subr.mxu0 0.0
  %311 = vmatpush1.msra.mxu0 %v267
  %312 = vmatprep.subr.mxu0 0.0
  %313 = vmatpush2.msra.mxu0 0.0
  %314 = vmatprep.subr.mxu0 0.0
  %315 = vmatpush2.msra.mxu0 0.0
  %316 = vmatprep.subr.mxu0 0.0
  %317 = vmatpush2.msra.mxu0 0.0
  %318 = vmatprep.subr.mxu0 0.0
  %319 = vmatpush2.msra.mxu0 0.0
  %320 = vmatprep.subr.mxu0 0.0
  %321 = vmatpush2.msra.mxu0 0.0
  %322 = vmatprep.subr.mxu0 0.0
  %323 = vmatpush2.msra.mxu0 0.0
  %324 = vmatprep.subr.mxu0 0.0
  %325 = vmatpush2.msra.mxu0 0.0
  %326 = vmatprep.subr.mxu0 0.0
  %327 = vmatpush2.msra.mxu0 0.0
  %328 = vmatprep.subr.mxu0 0.0
  %329 = vmatpush2.msra.mxu0 0.0
  %330 = vmatprep.subr.mxu0 0.0
  %331 = vmatpush2.msra.mxu0 0.0
  %332 = vmatprep.subr.mxu0 0.0
  %333 = vmatpush2.msra.mxu0 0.0
  %334 = vmatprep.subr.mxu0 0.0
  %335 = vmatpush2.msra.mxu0 0.0
  %336 = vmatprep.subr.mxu0 0.0
  %337 = vmatpush2.msra.mxu0 0.0
  %338 = vmatprep.subr.mxu0 0.0
  %339 = vmatpush2.msra.mxu0 0.0
  %340 = vmatprep.subr.mxu0 0.0
  %341 = vmatpush2.msra.mxu0 0.0
  %342 = vmatprep.subr.mxu0 0.0
  %343 = vmatpush2.msra.mxu0 0.0
  %344 = vmatprep.mubr.f32.mxu0 0.0
  %345 = vmatmul.mubr.f32.gmra.mxu0 %v278
  %v346 = vpop.f32.mrf.mxu0
  %v347 = vadd.f32 0.0, %v346
  %v348 = vpop.f32.mrf.mxu0
  %349 = vdwg.mxu0
  %v350 = vadd.f32 %v276, %v347
  %v351 = vmul.f32 %v350, 0.5
  %v352 = vsel %vm275, %v350, %v351
  %v353 = vtanh.pop %v352
  %v354 = vadd.f32 %v353, 1.0
  %v355 = vmul.f32 %v354, 0.5
  %v356 = vsel %vm275, %v353, %v355
  %v357 = vmul.f32 %v356, 0.0
  %359 = vrot.lane.b32.xlu0 %v356, 64
  %v360 = vpop.permute.xlu0 %359
  %v362 = vmul.f32 %v356, %v360
  %364 = vrot.lane.b32.xlu0 %v362, 32
  %v365 = vpop.permute.xlu0 %364
  %v367 = vadd.f32 %v357, %v365
  %v368 = vtanh.pop %v367
  %370 = vrot.lane.b32.xlu0 %v368, 64
  %v371 = vpop.permute.xlu0 %370
  %v373 = vmul.f32 %v356, %v371
  %375 = vrot.lane.b32.xlu0 %v373, 32
  %v376 = vpop.permute.xlu0 %375
  %vm378 = vcmask 257024
  %379 = vst.msk [vmem:[#allocation3] sm:$0xf] %vm378, %v376
  %381 = vrot.lane.b32.xlu0 %v367, 96
  %v382 = vpop.permute.xlu0 %381
  %384 = vst.msk [vmem:[#allocation4] sm:$0xf] %vm378, %v382
  %v385 = vld [vmem:[#allocation2 + $0x4] sm:$0xf]
  %v386 = vsel %vm165, %v376, 0
  %388 = vmatprep.subr.mxu0 0.0
  %389 = vmatpush1.msra.mxu0 0.0
  %390 = vmatprep.subr.mxu0 0.0
  %391 = vmatpush1.msra.mxu0 0.0
  %392 = vmatprep.subr.mxu0 0.0
  %393 = vmatpush1.msra.mxu0 0.0
  %394 = vmatprep.subr.mxu0 0.0
  %395 = vmatpush1.msra.mxu0 0.0
  %396 = vmatprep.subr.mxu0 0.0
  %397 = vmatpush1.msra.mxu0 0.0
  %398 = vmatprep.subr.mxu0 0.0
  %399 = vmatpush1.msra.mxu0 0.0
  %400 = vmatprep.subr.mxu0 0.0
  %401 = vmatpush1.msra.mxu0 0.0
  %402 = vmatprep.subr.mxu0 0.0
  %403 = vmatpush1.msra.mxu0 0.0
  %404 = vmatprep.subr.mxu0 0.0
  %405 = vmatpush1.msra.mxu0 0.0
  %406 = vmatprep.subr.mxu0 0.0
  %407 = vmatpush1.msra.mxu0 0.0
  %408 = vmatprep.subr.mxu0 0.0
  %409 = vmatpush1.msra.mxu0 0.0
  %410 = vmatprep.subr.mxu0 0.0
  %411 = vmatpush1.msra.mxu0 0.0
  %412 = vmatprep.subr.mxu0 0.0
  %413 = vmatpush1.msra.mxu0 %v270
  %414 = vmatprep.subr.mxu0 0.0
  %415 = vmatpush1.msra.mxu0 %v269
  %416 = vmatprep.subr.mxu0 0.0
  %417 = vmatpush1.msra.mxu0 %v268
  %418 = vmatprep.subr.mxu0 0.0
  %419 = vmatpush1.msra.mxu0 %v267
  %420 = vmatprep.subr.mxu0 0.0
  %421 = vmatpush2.msra.mxu0 0.0
  %422 = vmatprep.subr.mxu0 0.0
  %423 = vmatpush2.msra.mxu0 0.0
  %424 = vmatprep.subr.mxu0 0.0
  %425 = vmatpush2.msra.mxu0 0.0
  %426 = vmatprep.subr.mxu0 0.0
  %427 = vmatpush2.msra.mxu0 0.0
  %428 = vmatprep.subr.mxu0 0.0
  %429 = vmatpush2.msra.mxu0 0.0
  %430 = vmatprep.subr.mxu0 0.0
  %431 = vmatpush2.msra.mxu0 0.0
  %432 = vmatprep.subr.mxu0 0.0
  %433 = vmatpush2.msra.mxu0 0.0
  %434 = vmatprep.subr.mxu0 0.0
  %435 = vmatpush2.msra.mxu0 0.0
  %436 = vmatprep.subr.mxu0 0.0
  %437 = vmatpush2.msra.mxu0 0.0
  %438 = vmatprep.subr.mxu0 0.0
  %439 = vmatpush2.msra.mxu0 0.0
  %440 = vmatprep.subr.mxu0 0.0
  %441 = vmatpush2.msra.mxu0 0.0
  %442 = vmatprep.subr.mxu0 0.0
  %443 = vmatpush2.msra.mxu0 0.0
  %444 = vmatprep.subr.mxu0 0.0
  %445 = vmatpush2.msra.mxu0 0.0
  %446 = vmatprep.subr.mxu0 0.0
  %447 = vmatpush2.msra.mxu0 0.0
  %448 = vmatprep.subr.mxu0 0.0
  %449 = vmatpush2.msra.mxu0 0.0
  %450 = vmatprep.subr.mxu0 0.0
  %451 = vmatpush2.msra.mxu0 0.0
  %452 = vmatprep.mubr.f32.mxu0 0.0
  %453 = vmatmul.mubr.f32.gmra.mxu0 %v386
  %v454 = vpop.f32.mrf.mxu0
  %v455 = vadd.f32 0.0, %v454
  %v456 = vpop.f32.mrf.mxu0
  %457 = vdwg.mxu0
  %v458 = vadd.f32 %v385, %v455
  %v459 = vmul.f32 %v458, 0.5
  %v460 = vsel %vm275, %v458, %v459
  %v461 = vtanh.pop %v460
  %v462 = vadd.f32 %v461, 1.0
  %v463 = vmul.f32 %v462, 0.5
  %v464 = vsel %vm275, %v461, %v463
  %v465 = vmul.f32 %v464, %v367
  %467 = vrot.lane.b32.xlu0 %v464, 64
  %v468 = vpop.permute.xlu0 %467
  %v470 = vmul.f32 %v464, %v468
  %472 = vrot.lane.b32.xlu0 %v470, 32
  %v473 = vpop.permute.xlu0 %472
  %v475 = vadd.f32 %v465, %v473
  %v476 = vtanh.pop %v475
  %478 = vrot.lane.b32.xlu0 %v476, 64
  %v479 = vpop.permute.xlu0 %478
  %v481 = vmul.f32 %v464, %v479
  %483 = vrot.lane.b32.xlu0 %v481, 32
  %v484 = vpop.permute.xlu0 %483
  %486 = vst.msk [vmem:[#allocation3 + $0x4] sm:$0xf] %vm378, %v484
  %488 = vrot.lane.b32.xlu0 %v475, 96
  %v489 = vpop.permute.xlu0 %488
  %491 = vst.msk [vmem:[#allocation4 + $0x4] sm:$0xf] %vm378, %v489
  %v492 = vld [vmem:[#allocation2 + $0x8] sm:$0xf]
  %v493 = vsel %vm165, %v484, 0
  %495 = vmatprep.subr.mxu0 0.0
  %496 = vmatpush1.msra.mxu0 0.0
  %497 = vmatprep.subr.mxu0 0.0
  %498 = vmatpush1.msra.mxu0 0.0
  %499 = vmatprep.subr.mxu0 0.0
  %500 = vmatpush1.msra.mxu0 0.0
  %501 = vmatprep.subr.mxu0 0.0
  %502 = vmatpush1.msra.mxu0 0.0
  %503 = vmatprep.subr.mxu0 0.0
  %504 = vmatpush1.msra.mxu0 0.0
  %505 = vmatprep.subr.mxu0 0.0
  %506 = vmatpush1.msra.mxu0 0.0
  %507 = vmatprep.subr.mxu0 0.0
  %508 = vmatpush1.msra.mxu0 0.0
  %509 = vmatprep.subr.mxu0 0.0
  %510 = vmatpush1.msra.mxu0 0.0
  %511 = vmatprep.subr.mxu0 0.0
  %512 = vmatpush1.msra.mxu0 0.0
  %513 = vmatprep.subr.mxu0 0.0
  %514 = vmatpush1.msra.mxu0 0.0
  %515 = vmatprep.subr.mxu0 0.0
  %516 = vmatpush1.msra.mxu0 0.0
  %517 = vmatprep.subr.mxu0 0.0
  %518 = vmatpush1.msra.mxu0 0.0
  %519 = vmatprep.subr.mxu0 0.0
  %520 = vmatpush1.msra.mxu0 %v270
  %521 = vmatprep.subr.mxu0 0.0
  %522 = vmatpush1.msra.mxu0 %v269
  %523 = vmatprep.subr.mxu0 0.0
  %524 = vmatpush1.msra.mxu0 %v268
  %525 = vmatprep.subr.mxu0 0.0
  %526 = vmatpush1.msra.mxu0 %v267
  %527 = vmatprep.subr.mxu0 0.0
  %528 = vmatpush2.msra.mxu0 0.0
  %529 = vmatprep.subr.mxu0 0.0
  %530 = vmatpush2.msra.mxu0 0.0
  %531 = vmatprep.subr.mxu0 0.0
  %532 = vmatpush2.msra.mxu0 0.0
  %533 = vmatprep.subr.mxu0 0.0
  %534 = vmatpush2.msra.mxu0 0.0
  %535 = vmatprep.subr.mxu0 0.0
  %536 = vmatpush2.msra.mxu0 0.0
  %537 = vmatprep.subr.mxu0 0.0
  %538 = vmatpush2.msra.mxu0 0.0
  %539 = vmatprep.subr.mxu0 0.0
  %540 = vmatpush2.msra.mxu0 0.0
  %541 = vmatprep.subr.mxu0 0.0
  %542 = vmatpush2.msra.mxu0 0.0
  %543 = vmatprep.subr.mxu0 0.0
  %544 = vmatpush2.msra.mxu0 0.0
  %545 = vmatprep.subr.mxu0 0.0
  %546 = vmatpush2.msra.mxu0 0.0
  %547 = vmatprep.subr.mxu0 0.0
  %548 = vmatpush2.msra.mxu0 0.0
  %549 = vmatprep.subr.mxu0 0.0
  %550 = vmatpush2.msra.mxu0 0.0
  %551 = vmatprep.subr.mxu0 0.0
  %552 = vmatpush2.msra.mxu0 0.0
  %553 = vmatprep.subr.mxu0 0.0
  %554 = vmatpush2.msra.mxu0 0.0
  %555 = vmatprep.subr.mxu0 0.0
  %556 = vmatpush2.msra.mxu0 0.0
  %557 = vmatprep.subr.mxu0 0.0
  %558 = vmatpush2.msra.mxu0 0.0
  %559 = vmatprep.mubr.f32.mxu0 0.0
  %560 = vmatmul.mubr.f32.gmra.mxu0 %v493
  %v561 = vpop.f32.mrf.mxu0
  %v562 = vadd.f32 0.0, %v561
  %v563 = vpop.f32.mrf.mxu0
  %564 = vdwg.mxu0
  %v565 = vadd.f32 %v492, %v562
  %v566 = vmul.f32 %v565, 0.5
  %v567 = vsel %vm275, %v565, %v566
  %v568 = vtanh.pop %v567
  %v569 = vadd.f32 %v568, 1.0
  %v570 = vmul.f32 %v569, 0.5
  %v571 = vsel %vm275, %v568, %v570
  %v572 = vmul.f32 %v571, %v475
  %574 = vrot.lane.b32.xlu0 %v571, 64
  %v575 = vpop.permute.xlu0 %574
  %v577 = vmul.f32 %v571, %v575
  %579 = vrot.lane.b32.xlu0 %v577, 32
  %v580 = vpop.permute.xlu0 %579
  %v582 = vadd.f32 %v572, %v580
  %v583 = vtanh.pop %v582
  %585 = vrot.lane.b32.xlu0 %v583, 64
  %v586 = vpop.permute.xlu0 %585
  %v588 = vmul.f32 %v571, %v586
  %590 = vrot.lane.b32.xlu0 %v588, 32
  %v591 = vpop.permute.xlu0 %590
  %593 = vst.msk [vmem:[#allocation3 + $0x8] sm:$0xf] %vm378, %v591
  %595 = vrot.lane.b32.xlu0 %v582, 96
  %v596 = vpop.permute.xlu0 %595
  %598 = vst.msk [vmem:[#allocation4 + $0x8] sm:$0xf] %vm378, %v596
  %v599 = vld [vmem:[#allocation2 + $0xc] sm:$0xf]
  %v600 = vsel %vm165, %v591, 0
  %602 = vmatprep.subr.mxu0 0.0
  %603 = vmatpush1.msra.mxu0 0.0
  %604 = vmatprep.subr.mxu0 0.0
  %605 = vmatpush1.msra.mxu0 0.0
  %606 = vmatprep.subr.mxu0 0.0
  %607 = vmatpush1.msra.mxu0 0.0
  %608 = vmatprep.subr.mxu0 0.0
  %609 = vmatpush1.msra.mxu0 0.0
  %610 = vmatprep.subr.mxu0 0.0
  %611 = vmatpush1.msra.mxu0 0.0
  %612 = vmatprep.subr.mxu0 0.0
  %613 = vmatpush1.msra.mxu0 0.0
  %614 = vmatprep.subr.mxu0 0.0
  %615 = vmatpush1.msra.mxu0 0.0
  %616 = vmatprep.subr.mxu0 0.0
  %617 = vmatpush1.msra.mxu0 0.0
  %618 = vmatprep.subr.mxu0 0.0
  %619 = vmatpush1.msra.mxu0 0.0
  %620 = vmatprep.subr.mxu0 0.0
  %621 = vmatpush1.msra.mxu0 0.0
  %622 = vmatprep.subr.mxu0 0.0
  %623 = vmatpush1.msra.mxu0 0.0
  %624 = vmatprep.subr.mxu0 0.0
  %625 = vmatpush1.msra.mxu0 0.0
  %626 = vmatprep.subr.mxu0 0.0
  %627 = vmatpush1.msra.mxu0 %v270
  %628 = vmatprep.subr.mxu0 0.0
  %629 = vmatpush1.msra.mxu0 %v269
  %630 = vmatprep.subr.mxu0 0.0
  %631 = vmatpush1.msra.mxu0 %v268
  %632 = vmatprep.subr.mxu0 0.0
  %633 = vmatpush1.msra.mxu0 %v267
  %634 = vmatprep.subr.mxu0 0.0
  %635 = vmatpush2.msra.mxu0 0.0
  %636 = vmatprep.subr.mxu0 0.0
  %637 = vmatpush2.msra.mxu0 0.0
  %638 = vmatprep.subr.mxu0 0.0
  %639 = vmatpush2.msra.mxu0 0.0
  %640 = vmatprep.subr.mxu0 0.0
  %641 = vmatpush2.msra.mxu0 0.0
  %642 = vmatprep.subr.mxu0 0.0
  %643 = vmatpush2.msra.mxu0 0.0
  %644 = vmatprep.subr.mxu0 0.0
  %645 = vmatpush2.msra.mxu0 0.0
  %646 = vmatprep.subr.mxu0 0.0
  %647 = vmatpush2.msra.mxu0 0.0
  %648 = vmatprep.subr.mxu0 0.0
  %649 = vmatpush2.msra.mxu0 0.0
  %650 = vmatprep.subr.mxu0 0.0
  %651 = vmatpush2.msra.mxu0 0.0
  %652 = vmatprep.subr.mxu0 0.0
  %653 = vmatpush2.msra.mxu0 0.0
  %654 = vmatprep.subr.mxu0 0.0
  %655 = vmatpush2.msra.mxu0 0.0
  %656 = vmatprep.subr.mxu0 0.0
  %657 = vmatpush2.msra.mxu0 0.0
  %658 = vmatprep.subr.mxu0 0.0
  %659 = vmatpush2.msra.mxu0 0.0
  %660 = vmatprep.subr.mxu0 0.0
  %661 = vmatpush2.msra.mxu0 0.0
  %662 = vmatprep.subr.mxu0 0.0
  %663 = vmatpush2.msra.mxu0 0.0
  %664 = vmatprep.subr.mxu0 0.0
  %665 = vmatpush2.msra.mxu0 0.0
  %666 = vmatprep.mubr.f32.mxu0 0.0
  %667 = vmatmul.mubr.f32.gmra.mxu0 %v600
  %v668 = vpop.f32.mrf.mxu0
  %v669 = vadd.f32 0.0, %v668
  %v670 = vpop.f32.mrf.mxu0
  %671 = vdwg.mxu0
  %v672 = vadd.f32 %v599, %v669
  %v673 = vmul.f32 %v672, 0.5
  %v674 = vsel %vm275, %v672, %v673
  %v675 = vtanh.pop %v674
  %v676 = vadd.f32 %v675, 1.0
  %v677 = vmul.f32 %v676, 0.5
  %v678 = vsel %vm275, %v675, %v677
  %v679 = vmul.f32 %v678, %v582
  %681 = vrot.lane.b32.xlu0 %v678, 64
  %v682 = vpop.permute.xlu0 %681
  %v684 = vmul.f32 %v678, %v682
  %686 = vrot.lane.b32.xlu0 %v684, 32
  %v687 = vpop.permute.xlu0 %686
  %v689 = vadd.f32 %v679, %v687
  %v690 = vtanh.pop %v689
  %692 = vrot.lane.b32.xlu0 %v690, 64
  %v693 = vpop.permute.xlu0 %692
  %v695 = vmul.f32 %v678, %v693
  %697 = vrot.lane.b32.xlu0 %v695, 32
  %v698 = vpop.permute.xlu0 %697
  %700 = vst.msk [vmem:[#allocation3 + $0xc] sm:$0xf] %vm378, %v698
  %702 = vrot.lane.b32.xlu0 %v689, 96
  %v703 = vpop.permute.xlu0 %702
  %705 = vst.msk [vmem:[#allocation4 + $0xc] sm:$0xf] %vm378, %v703
  %v706 = vld [vmem:[#allocation2 + $0x10] sm:$0xf]
  %v707 = vsel %vm165, %v698, 0
  %709 = vmatprep.subr.mxu0 0.0
  %710 = vmatpush1.msra.mxu0 0.0
  %711 = vmatprep.subr.mxu0 0.0
  %712 = vmatpush1.msra.mxu0 0.0
  %713 = vmatprep.subr.mxu0 0.0
  %714 = vmatpush1.msra.mxu0 0.0
  %715 = vmatprep.subr.mxu0 0.0
  %716 = vmatpush1.msra.mxu0 0.0
  %717 = vmatprep.subr.mxu0 0.0
  %718 = vmatpush1.msra.mxu0 0.0
  %719 = vmatprep.subr.mxu0 0.0
  %720 = vmatpush1.msra.mxu0 0.0
  %721 = vmatprep.subr.mxu0 0.0
  %722 = vmatpush1.msra.mxu0 0.0
  %723 = vmatprep.subr.mxu0 0.0
  %724 = vmatpush1.msra.mxu0 0.0
  %725 = vmatprep.subr.mxu0 0.0
  %726 = vmatpush1.msra.mxu0 0.0
  %727 = vmatprep.subr.mxu0 0.0
  %728 = vmatpush1.msra.mxu0 0.0
  %729 = vmatprep.subr.mxu0 0.0
  %730 = vmatpush1.msra.mxu0 0.0
  %731 = vmatprep.subr.mxu0 0.0
  %732 = vmatpush1.msra.mxu0 0.0
  %733 = vmatprep.subr.mxu0 0.0
  %734 = vmatpush1.msra.mxu0 %v270
  %735 = vmatprep.subr.mxu0 0.0
  %736 = vmatpush1.msra.mxu0 %v269
  %737 = vmatprep.subr.mxu0 0.0
  %738 = vmatpush1.msra.mxu0 %v268
  %739 = vmatprep.subr.mxu0 0.0
  %740 = vmatpush1.msra.mxu0 %v267
  %741 = vmatprep.subr.mxu0 0.0
  %742 = vmatpush2.msra.mxu0 0.0
  %743 = vmatprep.subr.mxu0 0.0
  %744 = vmatpush2.msra.mxu0 0.0
  %745 = vmatprep.subr.mxu0 0.0
  %746 = vmatpush2.msra.mxu0 0.0
  %747 = vmatprep.subr.mxu0 0.0
  %748 = vmatpush2.msra.mxu0 0.0
  %749 = vmatprep.subr.mxu0 0.0
  %750 = vmatpush2.msra.mxu0 0.0
  %751 = vmatprep.subr.mxu0 0.0
  %752 = vmatpush2.msra.mxu0 0.0
  %753 = vmatprep.subr.mxu0 0.0
  %754 = vmatpush2.msra.mxu0 0.0
  %755 = vmatprep.subr.mxu0 0.0
  %756 = vmatpush2.msra.mxu0 0.0
  %757 = vmatprep.subr.mxu0 0.0
  %758 = vmatpush2.msra.mxu0 0.0
  %759 = vmatprep.subr.mxu0 0.0
  %760 = vmatpush2.msra.mxu0 0.0
  %761 = vmatprep.subr.mxu0 0.0
  %762 = vmatpush2.msra.mxu0 0.0
  %763 = vmatprep.subr.mxu0 0.0
  %764 = vmatpush2.msra.mxu0 0.0
  %765 = vmatprep.subr.mxu0 0.0
  %766 = vmatpush2.msra.mxu0 0.0
  %767 = vmatprep.subr.mxu0 0.0
  %768 = vmatpush2.msra.mxu0 0.0
  %769 = vmatprep.subr.mxu0 0.0
  %770 = vmatpush2.msra.mxu0 0.0
  %771 = vmatprep.subr.mxu0 0.0
  %772 = vmatpush2.msra.mxu0 0.0
  %773 = vmatprep.mubr.f32.mxu0 0.0
  %774 = vmatmul.mubr.f32.gmra.mxu0 %v707
  %v775 = vpop.f32.mrf.mxu0
  %v776 = vadd.f32 0.0, %v775
  %v777 = vpop.f32.mrf.mxu0
  %778 = vdwg.mxu0
  %v779 = vadd.f32 %v706, %v776
  %v780 = vmul.f32 %v779, 0.5
  %v781 = vsel %vm275, %v779, %v780
  %v782 = vtanh.pop %v781
  %v783 = vadd.f32 %v782, 1.0
  %v784 = vmul.f32 %v783, 0.5
  %v785 = vsel %vm275, %v782, %v784
  %v786 = vmul.f32 %v785, %v689
  %788 = vrot.lane.b32.xlu0 %v785, 64
  %v789 = vpop.permute.xlu0 %788
  %v791 = vmul.f32 %v785, %v789
  %793 = vrot.lane.b32.xlu0 %v791, 32
  %v794 = vpop.permute.xlu0 %793
  %v796 = vadd.f32 %v786, %v794
  %v797 = vtanh.pop %v796
  %799 = vrot.lane.b32.xlu0 %v797, 64
  %v800 = vpop.permute.xlu0 %799
  %v802 = vmul.f32 %v785, %v800
  %804 = vrot.lane.b32.xlu0 %v802, 32
  %v805 = vpop.permute.xlu0 %804
  %807 = vst.msk [vmem:[#allocation3 + $0x10] sm:$0xf] %vm378, %v805
  %809 = vrot.lane.b32.xlu0 %v796, 96
  %v810 = vpop.permute.xlu0 %809
  %812 = vst.msk [vmem:[#allocation4 + $0x10] sm:$0xf] %vm378, %v810
  %v813 = vld [vmem:[#allocation2 + $0x14] sm:$0xf]
  %v814 = vsel %vm165, %v805, 0
  %816 = vmatprep.subr.mxu0 0.0
  %817 = vmatpush1.msra.mxu0 0.0
  %818 = vmatprep.subr.mxu0 0.0
  %819 = vmatpush1.msra.mxu0 0.0
  %820 = vmatprep.subr.mxu0 0.0
  %821 = vmatpush1.msra.mxu0 0.0
  %822 = vmatprep.subr.mxu0 0.0
  %823 = vmatpush1.msra.mxu0 0.0
  %824 = vmatprep.subr.mxu0 0.0
  %825 = vmatpush1.msra.mxu0 0.0
  %826 = vmatprep.subr.mxu0 0.0
  %827 = vmatpush1.msra.mxu0 0.0
  %828 = vmatprep.subr.mxu0 0.0
  %829 = vmatpush1.msra.mxu0 0.0
  %830 = vmatprep.subr.mxu0 0.0
  %831 = vmatpush1.msra.mxu0 0.0
  %832 = vmatprep.subr.mxu0 0.0
  %833 = vmatpush1.msra.mxu0 0.0
  %834 = vmatprep.subr.mxu0 0.0
  %835 = vmatpush1.msra.mxu0 0.0
  %836 = vmatprep.subr.mxu0 0.0
  %837 = vmatpush1.msra.mxu0 0.0
  %838 = vmatprep.subr.mxu0 0.0
  %839 = vmatpush1.msra.mxu0 0.0
  %840 = vmatprep.subr.mxu0 0.0
  %841 = vmatpush1.msra.mxu0 %v270
  %842 = vmatprep.subr.mxu0 0.0
  %843 = vmatpush1.msra.mxu0 %v269
  %844 = vmatprep.subr.mxu0 0.0
  %845 = vmatpush1.msra.mxu0 %v268
  %846 = vmatprep.subr.mxu0 0.0
  %847 = vmatpush1.msra.mxu0 %v267
  %848 = vmatprep.subr.mxu0 0.0
  %849 = vmatpush2.msra.mxu0 0.0
  %850 = vmatprep.subr.mxu0 0.0
  %851 = vmatpush2.msra.mxu0 0.0
  %852 = vmatprep.subr.mxu0 0.0
  %853 = vmatpush2.msra.mxu0 0.0
  %854 = vmatprep.subr.mxu0 0.0
  %855 = vmatpush2.msra.mxu0 0.0
  %856 = vmatprep.subr.mxu0 0.0
  %857 = vmatpush2.msra.mxu0 0.0
  %858 = vmatprep.subr.mxu0 0.0
  %859 = vmatpush2.msra.mxu0 0.0
  %860 = vmatprep.subr.mxu0 0.0
  %861 = vmatpush2.msra.mxu0 0.0
  %862 = vmatprep.subr.mxu0 0.0
  %863 = vmatpush2.msra.mxu0 0.0
  %864 = vmatprep.subr.mxu0 0.0
  %865 = vmatpush2.msra.mxu0 0.0
  %866 = vmatprep.subr.mxu0 0.0
  %867 = vmatpush2.msra.mxu0 0.0
  %868 = vmatprep.subr.mxu0 0.0
  %869 = vmatpush2.msra.mxu0 0.0
  %870 = vmatprep.subr.mxu0 0.0
  %871 = vmatpush2.msra.mxu0 0.0
  %872 = vmatprep.subr.mxu0 0.0
  %873 = vmatpush2.msra.mxu0 0.0
  %874 = vmatprep.subr.mxu0 0.0
  %875 = vmatpush2.msra.mxu0 0.0
  %876 = vmatprep.subr.mxu0 0.0
  %877 = vmatpush2.msra.mxu0 0.0
  %878 = vmatprep.subr.mxu0 0.0
  %879 = vmatpush2.msra.mxu0 0.0
  %880 = vmatprep.mubr.f32.mxu0 0.0
  %881 = vmatmul.mubr.f32.gmra.mxu0 %v814
  %v882 = vpop.f32.mrf.mxu0
  %v883 = vadd.f32 0.0, %v882
  %v884 = vpop.f32.mrf.mxu0
  %885 = vdwg.mxu0
  %v886 = vadd.f32 %v813, %v883
  %v887 = vmul.f32 %v886, 0.5
  %v888 = vsel %vm275, %v886, %v887
  %v889 = vtanh.pop %v888
  %v890 = vadd.f32 %v889, 1.0
  %v891 = vmul.f32 %v890, 0.5
  %v892 = vsel %vm275, %v889, %v891
  %v893 = vmul.f32 %v892, %v796
  %895 = vrot.lane.b32.xlu0 %v892, 64
  %v896 = vpop.permute.xlu0 %895
  %v898 = vmul.f32 %v892, %v896
  %900 = vrot.lane.b32.xlu0 %v898, 32
  %v901 = vpop.permute.xlu0 %900
  %v903 = vadd.f32 %v893, %v901
  %v904 = vtanh.pop %v903
  %906 = vrot.lane.b32.xlu0 %v904, 64
  %v907 = vpop.permute.xlu0 %906
  %v909 = vmul.f32 %v892, %v907
  %911 = vrot.lane.b32.xlu0 %v909, 32
  %v912 = vpop.permute.xlu0 %911
  %914 = vst.msk [vmem:[#allocation3 + $0x14] sm:$0xf] %vm378, %v912
  %916 = vrot.lane.b32.xlu0 %v903, 96
  %v917 = vpop.permute.xlu0 %916
  %919 = vst.msk [vmem:[#allocation4 + $0x14] sm:$0xf] %vm378, %v917
  %v920 = vld [vmem:[#allocation2 + $0x18] sm:$0xf]
  %v921 = vsel %vm165, %v912, 0
  %923 = vmatprep.subr.mxu0 0.0
  %924 = vmatpush1.msra.mxu0 0.0
  %925 = vmatprep.subr.mxu0 0.0
  %926 = vmatpush1.msra.mxu0 0.0
  %927 = vmatprep.subr.mxu0 0.0
  %928 = vmatpush1.msra.mxu0 0.0
  %929 = vmatprep.subr.mxu0 0.0
  %930 = vmatpush1.msra.mxu0 0.0
  %931 = vmatprep.subr.mxu0 0.0
  %932 = vmatpush1.msra.mxu0 0.0
  %933 = vmatprep.subr.mxu0 0.0
  %934 = vmatpush1.msra.mxu0 0.0
  %935 = vmatprep.subr.mxu0 0.0
  %936 = vmatpush1.msra.mxu0 0.0
  %937 = vmatprep.subr.mxu0 0.0
  %938 = vmatpush1.msra.mxu0 0.0
  %939 = vmatprep.subr.mxu0 0.0
  %940 = vmatpush1.msra.mxu0 0.0
  %941 = vmatprep.subr.mxu0 0.0
  %942 = vmatpush1.msra.mxu0 0.0
  %943 = vmatprep.subr.mxu0 0.0
  %944 = vmatpush1.msra.mxu0 0.0
  %945 = vmatprep.subr.mxu0 0.0
  %946 = vmatpush1.msra.mxu0 0.0
  %947 = vmatprep.subr.mxu0 0.0
  %948 = vmatpush1.msra.mxu0 %v270
  %949 = vmatprep.subr.mxu0 0.0
  %950 = vmatpush1.msra.mxu0 %v269
  %951 = vmatprep.subr.mxu0 0.0
  %952 = vmatpush1.msra.mxu0 %v268
  %953 = vmatprep.subr.mxu0 0.0
  %954 = vmatpush1.msra.mxu0 %v267
  %955 = vmatprep.subr.mxu0 0.0
  %956 = vmatpush2.msra.mxu0 0.0
  %957 = vmatprep.subr.mxu0 0.0
  %958 = vmatpush2.msra.mxu0 0.0
  %959 = vmatprep.subr.mxu0 0.0
  %960 = vmatpush2.msra.mxu0 0.0
  %961 = vmatprep.subr.mxu0 0.0
  %962 = vmatpush2.msra.mxu0 0.0
  %963 = vmatprep.subr.mxu0 0.0
  %964 = vmatpush2.msra.mxu0 0.0
  %965 = vmatprep.subr.mxu0 0.0
  %966 = vmatpush2.msra.mxu0 0.0
  %967 = vmatprep.subr.mxu0 0.0
  %968 = vmatpush2.msra.mxu0 0.0
  %969 = vmatprep.subr.mxu0 0.0
  %970 = vmatpush2.msra.mxu0 0.0
  %971 = vmatprep.subr.mxu0 0.0
  %972 = vmatpush2.msra.mxu0 0.0
  %973 = vmatprep.subr.mxu0 0.0
  %974 = vmatpush2.msra.mxu0 0.0
  %975 = vmatprep.subr.mxu0 0.0
  %976 = vmatpush2.msra.mxu0 0.0
  %977 = vmatprep.subr.mxu0 0.0
  %978 = vmatpush2.msra.mxu0 0.0
  %979 = vmatprep.subr.mxu0 0.0
  %980 = vmatpush2.msra.mxu0 0.0
  %981 = vmatprep.subr.mxu0 0.0
  %982 = vmatpush2.msra.mxu0 0.0
  %983 = vmatprep.subr.mxu0 0.0
  %984 = vmatpush2.msra.mxu0 0.0
  %985 = vmatprep.subr.mxu0 0.0
  %986 = vmatpush2.msra.mxu0 0.0
  %987 = vmatprep.mubr.f32.mxu0 0.0
  %988 = vmatmul.mubr.f32.gmra.mxu0 %v921
  %v989 = vpop.f32.mrf.mxu0
  %v990 = vadd.f32 0.0, %v989
  %v991 = vpop.f32.mrf.mxu0
  %992 = vdwg.mxu0
  %v993 = vadd.f32 %v920, %v990
  %v994 = vmul.f32 %v993, 0.5
  %v995 = vsel %vm275, %v993, %v994
  %v996 = vtanh.pop %v995
  %v997 = vadd.f32 %v996, 1.0
  %v998 = vmul.f32 %v997, 0.5
  %v999 = vsel %vm275, %v996, %v998
  %v1000 = vmul.f32 %v999, %v903
  %1002 = vrot.lane.b32.xlu0 %v999, 64
  %v1003 = vpop.permute.xlu0 %1002
  %v1005 = vmul.f32 %v999, %v1003
  %1007 = vrot.lane.b32.xlu0 %v1005, 32
  %v1008 = vpop.permute.xlu0 %1007
  %v1010 = vadd.f32 %v1000, %v1008
  %v1011 = vtanh.pop %v1010
  %1013 = vrot.lane.b32.xlu0 %v1011, 64
  %v1014 = vpop.permute.xlu0 %1013
  %v1016 = vmul.f32 %v999, %v1014
  %1018 = vrot.lane.b32.xlu0 %v1016, 32
  %v1019 = vpop.permute.xlu0 %1018
  %1021 = vst.msk [vmem:[#allocation3 + $0x18] sm:$0xf] %vm378, %v1019
  %1023 = vrot.lane.b32.xlu0 %v1010, 96
  %v1024 = vpop.permute.xlu0 %1023
  %1026 = vst.msk [vmem:[#allocation4 + $0x18] sm:$0xf] %vm378, %v1024
  %v1027 = vld [vmem:[#allocation2 + $0x1c] sm:$0xf]
  %v1028 = vsel %vm165, %v1019, 0
  %1030 = vmatprep.subr.mxu0 0.0
  %1031 = vmatpush1.msra.mxu0 0.0
  %1032 = vmatprep.subr.mxu0 0.0
  %1033 = vmatpush1.msra.mxu0 0.0
  %1034 = vmatprep.subr.mxu0 0.0
  %1035 = vmatpush1.msra.mxu0 0.0
  %1036 = vmatprep.subr.mxu0 0.0
  %1037 = vmatpush1.msra.mxu0 0.0
  %1038 = vmatprep.subr.mxu0 0.0
  %1039 = vmatpush1.msra.mxu0 0.0
  %1040 = vmatprep.subr.mxu0 0.0
  %1041 = vmatpush1.msra.mxu0 0.0
  %1042 = vmatprep.subr.mxu0 0.0
  %1043 = vmatpush1.msra.mxu0 0.0
  %1044 = vmatprep.subr.mxu0 0.0
  %1045 = vmatpush1.msra.mxu0 0.0
  %1046 = vmatprep.subr.mxu0 0.0
  %1047 = vmatpush1.msra.mxu0 0.0
  %1048 = vmatprep.subr.mxu0 0.0
  %1049 = vmatpush1.msra.mxu0 0.0
  %1050 = vmatprep.subr.mxu0 0.0
  %1051 = vmatpush1.msra.mxu0 0.0
  %1052 = vmatprep.subr.mxu0 0.0
  %1053 = vmatpush1.msra.mxu0 0.0
  %1054 = vmatprep.subr.mxu0 0.0
  %1055 = vmatpush1.msra.mxu0 %v270
  %1056 = vmatprep.subr.mxu0 0.0
  %1057 = vmatpush1.msra.mxu0 %v269
  %1058 = vmatprep.subr.mxu0 0.0
  %1059 = vmatpush1.msra.mxu0 %v268
  %1060 = vmatprep.subr.mxu0 0.0
  %1061 = vmatpush1.msra.mxu0 %v267
  %1062 = vmatprep.subr.mxu0 0.0
  %1063 = vmatpush2.msra.mxu0 0.0
  %1064 = vmatprep.subr.mxu0 0.0
  %1065 = vmatpush2.msra.mxu0 0.0
  %1066 = vmatprep.subr.mxu0 0.0
  %1067 = vmatpush2.msra.mxu0 0.0
  %1068 = vmatprep.subr.mxu0 0.0
  %1069 = vmatpush2.msra.mxu0 0.0
  %1070 = vmatprep.subr.mxu0 0.0
  %1071 = vmatpush2.msra.mxu0 0.0
  %1072 = vmatprep.subr.mxu0 0.0
  %1073 = vmatpush2.msra.mxu0 0.0
  %1074 = vmatprep.subr.mxu0 0.0
  %1075 = vmatpush2.msra.mxu0 0.0
  %1076 = vmatprep.subr.mxu0 0.0
  %1077 = vmatpush2.msra.mxu0 0.0
  %1078 = vmatprep.subr.mxu0 0.0
  %1079 = vmatpush2.msra.mxu0 0.0
  %1080 = vmatprep.subr.mxu0 0.0
  %1081 = vmatpush2.msra.mxu0 0.0
  %1082 = vmatprep.subr.mxu0 0.0
  %1083 = vmatpush2.msra.mxu0 0.0
  %1084 = vmatprep.subr.mxu0 0.0
  %1085 = vmatpush2.msra.mxu0 0.0
  %1086 = vmatprep.subr.mxu0 0.0
  %1087 = vmatpush2.msra.mxu0 0.0
  %1088 = vmatprep.subr.mxu0 0.0
  %1089 = vmatpush2.msra.mxu0 0.0
  %1090 = vmatprep.subr.mxu0 0.0
  %1091 = vmatpush2.msra.mxu0 0.0
  %1092 = vmatprep.subr.mxu0 0.0
  %1093 = vmatpush2.msra.mxu0 0.0
  %1094 = vmatprep.mubr.f32.mxu0 0.0
  %1095 = vmatmul.mubr.f32.gmra.mxu0 %v1028
  %v1096 = vpop.f32.mrf.mxu0
  %v1097 = vadd.f32 0.0, %v1096
  %v1098 = vpop.f32.mrf.mxu0
  %1099 = vdwg.mxu0
  %v1100 = vadd.f32 %v1027, %v1097
  %v1101 = vmul.f32 %v1100, 0.5
  %v1102 = vsel %vm275, %v1100, %v1101
  %v1103 = vtanh.pop %v1102
  %v1104 = vadd.f32 %v1103, 1.0
  %v1105 = vmul.f32 %v1104, 0.5
  %v1106 = vsel %vm275, %v1103, %v1105
  %v1107 = vmul.f32 %v1106, %v1010
  %1109 = vrot.lane.b32.xlu0 %v1106, 64
  %v1110 = vpop.permute.xlu0 %1109
  %v1112 = vmul.f32 %v1106, %v1110
  %1114 = vrot.lane.b32.xlu0 %v1112, 32
  %v1115 = vpop.permute.xlu0 %1114
  %v1117 = vadd.f32 %v1107, %v1115
  %v1118 = vtanh.pop %v1117
  %1120 = vrot.lane.b32.xlu0 %v1118, 64
  %v1121 = vpop.permute.xlu0 %1120
  %v1123 = vmul.f32 %v1106, %v1121
  %1125 = vrot.lane.b32.xlu0 %v1123, 32
  %v1126 = vpop.permute.xlu0 %1125
  %1128 = vst.msk [vmem:[#allocation3 + $0x1c] sm:$0xf] %vm378, %v1126
  %1130 = vrot.lane.b32.xlu0 %v1117, 96
  %v1131 = vpop.permute.xlu0 %1130
  %1133 = vst.msk [vmem:[#allocation4 + $0x1c] sm:$0xf] %vm378, %v1131
  %v1134 = vld [vmem:[#allocation3] sm:$0xff]
  %v1135 = vld [vmem:[#allocation3 + $0x8] sm:$0xff]
  %v1136 = vld [vmem:[#allocation3 + $0x10] sm:$0xff]
  %v1137 = vld [vmem:[#allocation3 + $0x18] sm:$0xf]
  %vm1142 = vcmask 1043456
  %v1143 = vrot.slane %v1134, 4
  %v1144 = vrot.slane %v1135, 4
  %v1145 = vsel %vm1142, %v1143, %v1144
  %v1146 = vrot.slane %v1136, 4
  %v1147 = vsel %vm1142, %v1144, %v1146
  %v1148 = vrot.slane %v1137, 4
  %v1149 = vsel %vm1142, %v1146, %v1148
  %v1154 = vsel %vm1142, 0.0, %v1143
  %1155 = vst.msk [vmem:[%s9] sm:$0xff] %vm165, %v1154
  %1156 = vst.msk [vmem:[%s9 + $0x8] sm:$0xff] %vm165, %v1145
  %1157 = vst.msk [vmem:[%s9 + $0x10] sm:$0xff] %vm165, %v1147
  %1158 = vst.msk [vmem:[%s9 + $0x18] sm:$0xff] %vm165, %v1149
  %v1159 = vld [vmem:[#allocation4] sm:$0xff]
  %v1160 = vld [vmem:[#allocation4 + $0x8] sm:$0xff]
  %v1161 = vld [vmem:[#allocation4 + $0x10] sm:$0xff]
  %v1162 = vld [vmem:[#allocation4 + $0x18] sm:$0xf]
  %v1167 = vrot.slane %v1159, 4
  %v1168 = vrot.slane %v1160, 4
  %v1169 = vsel %vm1142, %v1167, %v1168
  %v1170 = vrot.slane %v1161, 4
  %v1171 = vsel %vm1142, %v1168, %v1170
  %v1172 = vrot.slane %v1162, 4
  %v1173 = vsel %vm1142, %v1170, %v1172
  %v1178 = vsel %vm1142, 0.0, %v1167
  %s1179 = scalar_lea.vmem %s9, 32
  %1180 = vst.msk [vmem:[%s1179] sm:$0xff] %vm165, %v1178
  %1181 = vst.msk [vmem:[%s1179 + $0x8] sm:$0xff] %vm165, %v1169
  %1182 = vst.msk [vmem:[%s1179 + $0x10] sm:$0xff] %vm165, %v1171
  %1183 = vst.msk [vmem:[%s1179 + $0x18] sm:$0xff] %vm165, %v1173
  %v1184 = vld [vmem:[#allocation3] sm:$0xff]
  %v1185 = vld [vmem:[#allocation3 + $0x8] sm:$0xff]
  %v1186 = vld [vmem:[#allocation3 + $0x10] sm:$0xff]
  %v1187 = vld [vmem:[#allocation3 + $0x18] sm:$0xff]
  %vm1188 = vcmp.gt.f32.partialorder %v1184, 0.0
  %vm1189 = vcmp.gt.f32.partialorder %v1185, 0.0
  %vm1190 = vcmp.gt.f32.partialorder %v1186, 0.0
  %vm1191 = vcmp.gt.f32.partialorder %v1187, 0.0
  %v1192 = vmul.f32 %v1184, 0.01
  %v1193 = vmul.f32 %v1185, 0.01
  %v1194 = vmul.f32 %v1186, 0.01
  %v1195 = vmul.f32 %v1187, 0.01
  %v1196 = vsel %vm1188, %v1184, %v1192
  %v1197 = vsel %vm1189, %v1185, %v1193
  %v1198 = vsel %vm1190, %v1186, %v1194
  %v1199 = vsel %vm1191, %v1187, %v1195
  %v1200 = vld [vmem:[%s6] sm:$0xff]
  %v1201 = vld [vmem:[%s6 + $0x8] sm:$0xff]
  %v1202 = vld [vmem:[%s6 + $0x10] sm:$0xff]
  %v1203 = vld [vmem:[%s6 + $0x18] sm:$0xff]
  %v1204 = vld [vmem:[%s7] sm:$0x1]
  %v1206 = vlaneseq
  %v1207 = vshrl.u32 %v1206, 7
  %v1208 = vsub.s32 0, %v1207
  %v1209 = vrot.slane %v1204, %v1208
  %v1212 = vsel %vm165, %v1196, 0
  %v1215 = vsel %vm165, %v1197, 0
  %v1218 = vsel %vm165, %v1198, 0
  %v1221 = vsel %vm165, %v1199, 0
  %1223 = vmatprep.subr.mxu0 0.0
  %1224 = vmatpush1.msra.mxu0 0.0
  %1225 = vmatprep.subr.mxu0 0.0
  %1226 = vmatpush1.msra.mxu0 0.0
  %1227 = vmatprep.subr.mxu0 0.0
  %1228 = vmatpush1.msra.mxu0 0.0
  %1229 = vmatprep.subr.mxu0 0.0
  %1230 = vmatpush1.msra.mxu0 0.0
  %1231 = vmatprep.subr.mxu0 0.0
  %1232 = vmatpush1.msra.mxu0 0.0
  %1233 = vmatprep.subr.mxu0 0.0
  %1234 = vmatpush1.msra.mxu0 0.0
  %1235 = vmatprep.subr.mxu0 0.0
  %1236 = vmatpush1.msra.mxu0 0.0
  %1237 = vmatprep.subr.mxu0 0.0
  %1238 = vmatpush1.msra.mxu0 0.0
  %1239 = vmatprep.subr.mxu0 0.0
  %1240 = vmatpush1.msra.mxu0 0.0
  %1241 = vmatprep.subr.mxu0 0.0
  %1242 = vmatpush1.msra.mxu0 0.0
  %1243 = vmatprep.subr.mxu0 0.0
  %1244 = vmatpush1.msra.mxu0 0.0
  %1245 = vmatprep.subr.mxu0 0.0
  %1246 = vmatpush1.msra.mxu0 0.0
  %1247 = vmatprep.subr.mxu0 0.0
  %1248 = vmatpush1.msra.mxu0 %v1203
  %1249 = vmatprep.subr.mxu0 0.0
  %1250 = vmatpush1.msra.mxu0 %v1202
  %1251 = vmatprep.subr.mxu0 0.0
  %1252 = vmatpush1.msra.mxu0 %v1201
  %1253 = vmatprep.subr.mxu0 0.0
  %1254 = vmatpush1.msra.mxu0 %v1200
  %1255 = vmatprep.subr.mxu0 0.0
  %1256 = vmatpush2.msra.mxu0 0.0
  %1257 = vmatprep.subr.mxu0 0.0
  %1258 = vmatpush2.msra.mxu0 0.0
  %1259 = vmatprep.subr.mxu0 0.0
  %1260 = vmatpush2.msra.mxu0 0.0
  %1261 = vmatprep.subr.mxu0 0.0
  %1262 = vmatpush2.msra.mxu0 0.0
  %1263 = vmatprep.subr.mxu0 0.0
  %1264 = vmatpush2.msra.mxu0 0.0
  %1265 = vmatprep.subr.mxu0 0.0
  %1266 = vmatpush2.msra.mxu0 0.0
  %1267 = vmatprep.subr.mxu0 0.0
  %1268 = vmatpush2.msra.mxu0 0.0
  %1269 = vmatprep.subr.mxu0 0.0
  %1270 = vmatpush2.msra.mxu0 0.0
  %1271 = vmatprep.subr.mxu0 0.0
  %1272 = vmatpush2.msra.mxu0 0.0
  %1273 = vmatprep.subr.mxu0 0.0
  %1274 = vmatpush2.msra.mxu0 0.0
  %1275 = vmatprep.subr.mxu0 0.0
  %1276 = vmatpush2.msra.mxu0 0.0
  %1277 = vmatprep.subr.mxu0 0.0
  %1278 = vmatpush2.msra.mxu0 0.0
  %1279 = vmatprep.subr.mxu0 0.0
  %1280 = vmatpush2.msra.mxu0 0.0
  %1281 = vmatprep.subr.mxu0 0.0
  %1282 = vmatpush2.msra.mxu0 0.0
  %1283 = vmatprep.subr.mxu0 0.0
  %1284 = vmatpush2.msra.mxu0 0.0
  %1285 = vmatprep.subr.mxu0 0.0
  %1286 = vmatpush2.msra.mxu0 0.0
  %1287 = vmatprep.mubr.f32.mxu0 0.0
  %1288 = vmatmul.mubr.f32.gmra.mxu0 %v1212
  %v1289 = vpop.f32.mrf.mxu0
  %v1290 = vadd.f32 %v1209, %v1289
  %v1291 = vpop.f32.mrf.mxu0
  %1292 = vmatprep.mubr.f32.mxu0 0.0
  %1293 = vmatmul.mubr.f32.gmra.mxu0 %v1215
  %v1294 = vpop.f32.mrf.mxu0
  %v1295 = vadd.f32 %v1209, %v1294
  %v1296 = vpop.f32.mrf.mxu0
  %1297 = vmatprep.mubr.f32.mxu0 0.0
  %1298 = vmatmul.mubr.f32.gmra.mxu0 %v1218
  %v1299 = vpop.f32.mrf.mxu0
  %v1300 = vadd.f32 %v1209, %v1299
  %v1301 = vpop.f32.mrf.mxu0
  %1302 = vmatprep.mubr.f32.mxu0 0.0
  %1303 = vmatmul.mubr.f32.gmra.mxu0 %v1221
  %v1304 = vpop.f32.mrf.mxu0
  %v1305 = vadd.f32 %v1209, %v1304
  %v1306 = vpop.f32.mrf.mxu0
  %1307 = vdwg.mxu0
  %vm1308 = vcmp.lt.s32.totalorder %v272, 8
  %v1309 = vtanh.pop %v1290
  %v1310 = vtanh.pop %v1295
  %v1311 = vtanh.pop %v1300
  %v1312 = vtanh.pop %v1305
  %vm1313 = vcmp.gt.f32.partialorder %v1290, 20.0
  %vm1314 = vcmp.gt.f32.partialorder %v1295, 20.0
  %vm1315 = vcmp.gt.f32.partialorder %v1300, 20.0
  %vm1316 = vcmp.gt.f32.partialorder %v1305, 20.0
  %v1317 = vmin.f32 %v1290, 20.0
  %v1318 = vmin.f32 %v1295, 20.0
  %v1319 = vmin.f32 %v1300, 20.0
  %v1320 = vmin.f32 %v1305, 20.0
  %v1321 = vmul.f32 %v1317, 1.442695
  %v1322 = vpow.pop %v1321
  %v1323 = vmul.f32 %v1318, 1.442695
  %v1324 = vpow.pop %v1323
  %v1325 = vmul.f32 %v1319, 1.442695
  %v1326 = vpow.pop %v1325
  %v1327 = vmul.f32 %v1320, 1.442695
  %v1328 = vpow.pop %v1327
  %v1329 = vadd.f32 %v1322, 1.0
  %v1330 = vlog2.pop %v1329
  %v1331 = vmul.f32 %v1330, 0.6931472
  %v1332 = vmul.f32 -0.5, %v1322
  %v1333 = vadd.f32 %v1332, 1.0
  %v1334 = vmul.f32 %v1333, %v1322
  %v1335 = vand.u32 2147483647, %v1322
  %vm1336 = vcmp.lt.f32.partialorder %v1335, 0.0004427343
  %v1337 = vsel %vm1336, %v1334, %v1331
  %v1338 = vadd.f32 %v1324, 1.0
  %v1339 = vlog2.pop %v1338
  %v1340 = vmul.f32 %v1339, 0.6931472
  %v1341 = vmul.f32 -0.5, %v1324
  %v1342 = vadd.f32 %v1341, 1.0
  %v1343 = vmul.f32 %v1342, %v1324
  %v1344 = vand.u32 2147483647, %v1324
  %vm1345 = vcmp.lt.f32.partialorder %v1344, 0.0004427343
  %v1346 = vsel %vm1345, %v1343, %v1340
  %v1347 = vadd.f32 %v1326, 1.0
  %v1348 = vlog2.pop %v1347
  %v1349 = vmul.f32 %v1348, 0.6931472
  %v1350 = vmul.f32 -0.5, %v1326
  %v1351 = vadd.f32 %v1350, 1.0
  %v1352 = vmul.f32 %v1351, %v1326
  %v1353 = vand.u32 2147483647, %v1326
  %vm1354 = vcmp.lt.f32.partialorder %v1353, 0.0004427343
  %v1355 = vsel %vm1354, %v1352, %v1349
  %v1356 = vadd.f32 %v1328, 1.0
  %v1357 = vlog2.pop %v1356
  %v1358 = vmul.f32 %v1357, 0.6931472
  %v1359 = vmul.f32 -0.5, %v1328
  %v1360 = vadd.f32 %v1359, 1.0
  %v1361 = vmul.f32 %v1360, %v1328
  %v1362 = vand.u32 2147483647, %v1328
  %vm1363 = vcmp.lt.f32.partialorder %v1362, 0.0004427343
  %v1364 = vsel %vm1363, %v1361, %v1358
  %v1365 = vsel %vm1313, %v1290, %v1337
  %v1366 = vsel %vm1314, %v1295, %v1346
  %v1367 = vsel %vm1315, %v1300, %v1355
  %v1368 = vsel %vm1316, %v1305, %v1364
  %v1369 = vadd.f32 %v1365, 1e-06
  %v1370 = vadd.f32 %v1366, 1e-06
  %v1371 = vadd.f32 %v1367, 1e-06
  %v1372 = vadd.f32 %v1368, 1e-06
  %v1373 = vsel %vm1308, %v1309, %v1369
  %v1374 = vsel %vm1308, %v1310, %v1370
  %v1375 = vsel %vm1308, %v1311, %v1371
  %v1376 = vsel %vm1308, %v1312, %v1372
  %1377 = vst.msk [vmem:[%s8] sm:$0xff] %vm44, %v1373
  %1378 = vst.msk [vmem:[%s8 + $0x8] sm:$0xff] %vm44, %v1374
  %1379 = vst.msk [vmem:[%s8 + $0x10] sm:$0xff] %vm44, %v1375
  %1380 = vst.msk [vmem:[%s8 + $0x18] sm:$0xff] %vm44, %v1376
  // Predicated region
  $region34: #{gaussian_lstm_policy_forward.1} parent=0 // pred_check
    _
  $region35: #{gaussian_lstm_policy_forward.1} parent=0 // pred_check_branch
    %1382 = sbr.rel (0) target = $region37
  $region36: #{gaussian_lstm_policy_forward.1} parent=0 // pred_region
    _
  $region37: #{gaussian_lstm_policy_forward.1} parent=0 // pred_fallthru
    _
  // Predicated region
  $region38: #{gaussian_lstm_policy_forward.1} parent=0 // pred_check
    _
  $region39: #{gaussian_lstm_policy_forward.1} parent=0 // pred_check_branch
    %1384 = sbr.rel (0) target = $region41
  $region40: #{gaussian_lstm_policy_forward.1} parent=0 // pred_region
    _
  $region41: #{gaussian_lstm_policy_forward.1} parent=0 // pred_fallthru
    _
  // Predicated region
  $region42: #{gaussian_lstm_policy_forward.1} parent=0 // pred_check
    _
  $region43: #{gaussian_lstm_policy_forward.1} parent=0 // pred_check_branch
    %1386 = sbr.rel (0) target = $region45
  $region44: #{gaussian_lstm_policy_forward.1} parent=0 // pred_region
    _
  $region45: #{gaussian_lstm_policy_forward.1} parent=0 // pred_fallthru
    _
  // Predicated region
  $region46: #{gaussian_lstm_policy_forward.1} parent=0 // pred_check
    _
  $region47: #{gaussian_lstm_policy_forward.1} parent=0 // pred_check_branch
    %1388 = sbr.rel (0) target = $region49
  $region48: #{gaussian_lstm_policy_forward.1} parent=0 // pred_region
    _
  $region49: #{gaussian_lstm_policy_forward.1} parent=0 // pred_fallthru
    _

</llo_original>
